<compile_context>
chip_gen: v7x
topology: tpu7x:2x2x1
jax: 0.10.0
libtpu: 0.0.40
codegen_flags: <defaults>
</compile_context>

<pallas_src>
import jax
import jax.numpy as jnp
import numpy as np
from jax.experimental import pallas as pl
from jax.experimental.pallas import tpu as pltpu


def _round_up(x, m):
    return (x + m - 1) // m * m


def gru_encoder_kernel(x_ref, wih_ref, whh_ref, bgi_ref, bhn_ref,
                       h_out_ref, gi_scratch):
    """One grid step = full GRU recurrence for one (large) batch block.

    x_ref      : (S*Bblk, E_pad)    bf16  block-contiguous, time-major rows
    wih_ref    : (E_pad, 3*H_pad)   bf16  input->gates weights (pre-transposed)
    whh_ref    : (H_pad, 3*H_pad)   bf16  hidden->gates weights (pre-transposed)
    bgi_ref    : (1, 3*H_pad)       f32   b_ih with b_hr/b_hz folded in
    bhn_ref    : (1, H_pad)         f32   b_hn (stays inside the r*(...) term)
    h_out_ref  : (Bblk, H_pad)      f32   final hidden state
    gi_scratch : (S*Bblk, 3*H_pad)  f32/bf16  precomputed input-side pre-acts
    """
    SB = x_ref.shape[0]
    B, H = h_out_ref.shape
    S = SB // B

    # (1) Input-side matmul for ALL time steps at once — one big MXU call,
    #     completely off the serial critical path.
    gi_all = (jnp.dot(x_ref[...], wih_ref[...],
                      preferred_element_type=jnp.float32)
              + bgi_ref[...])
    gi_scratch[...] = gi_all.astype(gi_scratch.dtype)

    whh = whh_ref[...]                                   # (H, 3H) bf16, loaded once
    b_hn = bhn_ref[...]                                  # (1, H)  f32

    # (2) Serial time recurrence: only h @ W_hh + gate math per step.
    def step(t, h):
        row = pl.multiple_of(t * B, B)
        gi = gi_scratch[pl.ds(row, B), :].astype(jnp.float32)   # (B, 3H)
        gh = jnp.dot(h.astype(jnp.bfloat16), whh,
                     preferred_element_type=jnp.float32)        # (B, 3H)
        r = jax.nn.sigmoid(gi[:, :H] + gh[:, :H])
        z = jax.nn.sigmoid(gi[:, H:2 * H] + gh[:, H:2 * H])
        n = jnp.tanh(gi[:, 2 * H:] + r * (gh[:, 2 * H:] + b_hn))
        return (1.0 - z) * n + z * h

    h0 = jnp.zeros((B, H), jnp.float32)
    # Partial unroll: the per-step body is tiny and latency-bound; unrolling
    # lets the scheduler hoist next-step gi loads under this step's MXU/EUP.
    h_final = jax.lax.fori_loop(0, S, step, h0,
                                unroll=(S if S <= 16 else 8))
    h_out_ref[...] = h_final.astype(h_out_ref.dtype)


def encoder_forward(source, emb_table, w_ih, w_hh, b_ih, b_hh):
    """source: (B, S) int32 token ids.  Returns final hidden state (B, H) f32."""
    batch, seq = source.shape
    emb_dim = emb_table.shape[1]
    hid = w_hh.shape[1]

    # Lane/sublane-aligned padded sizes.
    h_pad = _round_up(hid, 128)
    e_pad = _round_up(emb_dim, 128)
    b_pad = _round_up(batch, 8)

    # ---- batch-block sizing ------------------------------------------------
    # Prefer ONE large block (biggest MXU M, shortest serial chain).  Split
    # into exactly 2 blocks only when each stays MXU-filling (>=128 rows), so
    # v7x's two TensorCores both get a block via dimension_semantics=parallel.
    num_blocks = 2 if b_pad >= 256 else 1
    batch_block = _round_up(-(-b_pad // num_blocks), 8)

    def vmem_bytes(bblk, gi_itemsize):
        x_b = seq * bblk * e_pad * 2 * 2              # bf16 x block, 2 buffers
        w_b = (e_pad + h_pad) * 3 * h_pad * 2         # bf16 weights, Buffered(1)
        bias_b = (3 * h_pad + h_pad) * 4
        gi_b = seq * bblk * 3 * h_pad * gi_itemsize   # scratch slab
        out_b = bblk * h_pad * 4 * 2                  # f32 out, 2 buffers
        return x_b + w_b + bias_b + gi_b + out_b

    vmem_cap = 48 << 20   # stay well under the smallest physical VMEM (v7x 64 MiB)
    gi_dtype = jnp.float32
    if vmem_bytes(batch_block, 4) > vmem_cap:
        gi_dtype = jnp.bfloat16          # only when f32 doesn't fit (v6e/v7x sizes)
    while (vmem_bytes(batch_block, jnp.dtype(gi_dtype).itemsize) > vmem_cap
           and batch_block > 8):
        batch_block = _round_up(batch_block // 2, 8)

    b_pad = _round_up(b_pad, batch_block)
    num_bblocks = b_pad // batch_block

    # ---- activations: bf16 gather from a lane-padded table, then ONE
    # reshape/transpose into the block-contiguous layout the kernel DMAs. ----
    emb_bf16 = jnp.pad(emb_table.astype(jnp.bfloat16),
                       ((0, 0), (0, e_pad - emb_dim)))
    src_pad = jnp.pad(source, ((0, b_pad - batch), (0, 0)))
    x = jnp.take(emb_bf16, src_pad, axis=0)                # (b_pad, S, e_pad) bf16
    x = x.reshape(num_bblocks, batch_block, seq, e_pad)
    x = jnp.transpose(x, (0, 2, 1, 3))                     # (nb, S, Bblk, E)
    x = x.reshape(num_bblocks, seq * batch_block, e_pad)   # block-contiguous

    # ---- weights: per-gate pad + transpose into lane-aligned bf16 slabs. ----
    def pad_w_t(w, in_dim, in_pad):
        w3 = w.reshape(3, hid, in_dim).astype(jnp.float32)
        out = jnp.zeros((in_pad, 3 * h_pad), jnp.float32)
        for g in range(3):
            out = out.at[:in_dim, g * h_pad:g * h_pad + hid].set(w3[g].T)
        return out.astype(jnp.bfloat16)

    wih_t = pad_w_t(w_ih, emb_dim, e_pad)                  # (E_pad, 3H_pad)
    whh_t = pad_w_t(w_hh, hid, h_pad)                      # (H_pad, 3H_pad)

    # Fold b_ih (+ b_hr, b_hz) into the precomputed gate bias; keep b_hn apart
    # (nn.GRUCell multiplies it by r).
    bi3 = b_ih.reshape(3, hid).astype(jnp.float32)
    bh3 = b_hh.reshape(3, hid).astype(jnp.float32)
    gate_bias = jnp.stack([bi3[0] + bh3[0], bi3[1] + bh3[1], bi3[2]])
    bgi = jnp.zeros((1, 3 * h_pad), jnp.float32)
    for g in range(3):
        bgi = bgi.at[0, g * h_pad:g * h_pad + hid].set(gate_bias[g])
    bhn = jnp.zeros((1, h_pad), jnp.float32).at[0, :hid].set(bh3[2])

    # ---- pallas_call -------------------------------------------------------
    grid_spec = pltpu.PrefetchScalarGridSpec(
        num_scalar_prefetch=0,
        grid=(num_bblocks,),                               # independent batch blocks
        in_specs=[
            pl.BlockSpec((pl.Squeezed(), seq * batch_block, e_pad),
                         lambda b: (b, 0, 0)),
            # Constant-index weights/biases: single-buffered to save VMEM.
            pl.BlockSpec((e_pad, 3 * h_pad), lambda b: (0, 0),
                         pipeline_mode=pl.Buffered(1)),
            pl.BlockSpec((h_pad, 3 * h_pad), lambda b: (0, 0),
                         pipeline_mode=pl.Buffered(1)),
            pl.BlockSpec((1, 3 * h_pad), lambda b: (0, 0),
                         pipeline_mode=pl.Buffered(1)),
            pl.BlockSpec((1, h_pad), lambda b: (0, 0),
                         pipeline_mode=pl.Buffered(1)),
        ],
        out_specs=pl.BlockSpec((batch_block, h_pad), lambda b: (b, 0)),
        scratch_shapes=[
            pltpu.VMEM((seq * batch_block, 3 * h_pad), gi_dtype),
        ],
    )

    vmem_limit = int(vmem_bytes(batch_block, jnp.dtype(gi_dtype).itemsize) * 1.5)
    vmem_limit = min(max(vmem_limit + (2 << 20), 32 << 20), 96 << 20)

    flops = (2 * seq * b_pad * e_pad * 3 * h_pad
             + 2 * seq * b_pad * h_pad * 3 * h_pad)
    cost = pl.CostEstimate(
        flops=flops,
        transcendentals=3 * seq * b_pad * h_pad,
        bytes_accessed=(x.size * 2
                        + (e_pad + h_pad) * 3 * h_pad * 2
                        + b_pad * h_pad * 4))

    out = pl.pallas_call(
        gru_encoder_kernel,
        out_shape=jax.ShapeDtypeStruct((b_pad, h_pad), jnp.float32),
        grid_spec=grid_spec,
        compiler_params=pltpu.CompilerParams(
            dimension_semantics=("parallel",),
            vmem_limit_bytes=vmem_limit),
        cost_estimate=cost,
    )(x, wih_t, whh_t, bgi, bhn)

    return out[:batch, :hid]


def encoder_reference(source, emb_table, w_ih, w_hh, b_ih, b_hh):
    """Plain-JAX reference (PyTorch nn.GRUCell semantics), mirroring the
    kernel's bf16 matmul inputs / f32 accumulation so the comparison is tight."""
    rb = lambda a: a.astype(jnp.bfloat16).astype(jnp.float32)
    batch = source.shape[0]
    hid = w_hh.shape[1]
    embedded = jnp.take(emb_table, source, axis=0)                # (B, S, E)
    w_ih_q = rb(w_ih)
    w_hh_q = rb(w_hh)

    def step(h, x_t):
        gi = rb(x_t) @ w_ih_q.T + b_ih
        gh = rb(h) @ w_hh_q.T + b_hh
        i_r, i_z, i_n = jnp.split(gi, 3, axis=-1)
        h_r, h_z, h_n = jnp.split(gh, 3, axis=-1)
        r = jax.nn.sigmoid(i_r + h_r)
        z = jax.nn.sigmoid(i_z + h_z)
        n = jnp.tanh(i_n + r * h_n)
        h_new = (1.0 - z) * n + z * h
        return h_new, None

    h0 = jnp.zeros((batch, hid), jnp.float32)
    h_final, _ = jax.lax.scan(step, h0, jnp.transpose(embedded, (1, 0, 2)))
    return h_final


if __name__ == "__main__":
    # Small shapes consistent with the module.
    vocab_size = 50
    embedding_dim = 32
    hidden_dim = 32
    batch = 2
    seq_len = 8

    key = jax.random.PRNGKey(0)
    k_emb, k_wih, k_whh, k_bih, k_bhh, k_src = jax.random.split(key, 6)

    bound = 1.0 / np.sqrt(hidden_dim)
    emb_table = jax.random.normal(k_emb, (vocab_size, embedding_dim), jnp.float32)
    w_ih = jax.random.uniform(k_wih, (3 * hidden_dim, embedding_dim),
                              jnp.float32, -bound, bound)
    w_hh = jax.random.uniform(k_whh, (3 * hidden_dim, hidden_dim),
                              jnp.float32, -bound, bound)
    b_ih = jax.random.uniform(k_bih, (3 * hidden_dim,), jnp.float32, -bound, bound)
    b_hh = jax.random.uniform(k_bhh, (3 * hidden_dim,), jnp.float32, -bound, bound)

    source = jax.random.randint(k_src, (batch, seq_len), 0, vocab_size,
                                dtype=jnp.int32)

    h_kernel = encoder_forward(source, emb_table, w_ih, w_hh, b_ih, b_hh)
    jax.block_until_ready(h_kernel)

    h_ref = encoder_reference(source, emb_table, w_ih, w_hh, b_ih, b_hh)
    np.testing.assert_allclose(np.asarray(h_kernel), np.asarray(h_ref),
                               rtol=1e-3, atol=1e-4)

    print("KERNEL_OK")
</pallas_src>

<mosaic_0001>
module attributes {stable_mosaic.version = 11 : i64} {
  func.func @gru_encoder_kernel(%arg0: i32, %arg1: memref<1x64x128xbf16, #tpu.memory_space<vmem>>, %arg2: memref<128x384xbf16, #tpu.memory_space<vmem>>, %arg3: memref<128x384xbf16, #tpu.memory_space<vmem>>, %arg4: memref<1x384xf32, #tpu.memory_space<vmem>>, %arg5: memref<1x128xf32, #tpu.memory_space<vmem>>, %arg6: memref<8x128xf32, #tpu.memory_space<vmem>>, %arg7: memref<64x384xf32, #tpu.memory_space<vmem>>) attributes {dimension_semantics = [#tpu.dimension_semantics<parallel>], iteration_bounds = array<i64: 1>, scalar_prefetch = 0 : i64, scratch_operands = 1 : i64, tpu.core_type = #tpu.core_type<tc>, window_params = [{transform_indices = @transform_0, window_bounds = array<i64: 1, 64, 128>}, {pipeline_mode = #tpu.pipeline_mode<synchronous>, transform_indices = @transform_1, window_bounds = array<i64: 128, 384>}, {pipeline_mode = #tpu.pipeline_mode<synchronous>, transform_indices = @transform_2, window_bounds = array<i64: 128, 384>}, {pipeline_mode = #tpu.pipeline_mode<synchronous>, transform_indices = @transform_3, window_bounds = array<i64: 1, 384>}, {pipeline_mode = #tpu.pipeline_mode<synchronous>, transform_indices = @transform_4, window_bounds = array<i64: 1, 128>}, {transform_indices = @transform_5, window_bounds = array<i64: 8, 128>}]} {
    %c0 = arith.constant 0 : index
    %c0_0 = arith.constant 0 : index
    %c0_1 = arith.constant 0 : index
    %0 = vector.load %arg1[%c0, %c0_0, %c0_1] : memref<1x64x128xbf16, #tpu.memory_space<vmem>>, vector<1x64x128xbf16>
    %1 = vector.shape_cast %0 : vector<1x64x128xbf16> to vector<64x128xbf16>
    %c0_2 = arith.constant 0 : index
    %c0_3 = arith.constant 0 : index
    %2 = vector.load %arg2[%c0_2, %c0_3] : memref<128x384xbf16, #tpu.memory_space<vmem>>, vector<128x384xbf16>
    %cst = arith.constant dense<0.000000e+00> : vector<64x384xf32>
    %3 = tpu.matmul %1, %2, %cst {dimension_numbers = #tpu.dot_dimension_numbers<[1], [0], [0], [1], [0, 0, 1, 1], [], []>} : vector<64x128xbf16>, vector<128x384xbf16>, vector<64x384xf32> -> vector<64x384xf32>
    %c0_4 = arith.constant 0 : index
    %c0_5 = arith.constant 0 : index
    %4 = vector.load %arg4[%c0_4, %c0_5] : memref<1x384xf32, #tpu.memory_space<vmem>>, vector<1x384xf32>
    %5 = vector.broadcast %4 : vector<1x384xf32> to vector<64x384xf32>
    %6 = arith.addf %3, %5 : vector<64x384xf32>
    %c0_6 = arith.constant 0 : index
    %c0_7 = arith.constant 0 : index
    %7 = vector.load %arg7[%c0_6, %c0_7] : memref<64x384xf32, #tpu.memory_space<vmem>>, vector<64x384xf32>
    tpu.vector_store %arg7[%c0_6, %c0_7], %6 {strides = array<i32>} : memref<64x384xf32, #tpu.memory_space<vmem>>, vector<64x384xf32>,
    %c0_8 = arith.constant 0 : index
    %c0_9 = arith.constant 0 : index
    %8 = vector.load %arg3[%c0_8, %c0_9] : memref<128x384xbf16, #tpu.memory_space<vmem>>, vector<128x384xbf16>
    %c0_10 = arith.constant 0 : index
    %c0_11 = arith.constant 0 : index
    %9 = vector.load %arg5[%c0_10, %c0_11] : memref<1x128xf32, #tpu.memory_space<vmem>>, vector<1x128xf32>
    %cst_12 = arith.constant 0.000000e+00 : f32
    %10 = vector.broadcast %cst_12 : f32 to vector<8x128xf32>
    %c0_i32 = arith.constant 0 : i32
    %c8_i32 = arith.constant 8 : i32
    %11 = arith.muli %c0_i32, %c8_i32 : i32
    %12 = tpu.assume_multiple %11, 8 : i32
    %13 = arith.index_cast %12 : i32 to index
    %c0_13 = arith.constant 0 : index
    %14 = vector.load %arg7[%13, %c0_13] : memref<64x384xf32, #tpu.memory_space<vmem>>, vector<8x384xf32>
    %15 = arith.truncf %10 : vector<8x128xf32> to vector<8x128xbf16>
    %cst_14 = arith.constant dense<0.000000e+00> : vector<8x384xf32>
    %16 = tpu.matmul %15, %8, %cst_14 {dimension_numbers = #tpu.dot_dimension_numbers<[1], [0], [0], [1], [0, 0, 1, 1], [], []>} : vector<8x128xbf16>, vector<128x384xbf16>, vector<8x384xf32> -> vector<8x384xf32>
    %17 = vector.extract_strided_slice %14 {offsets = [0, 0], sizes = [8, 128], strides = [1, 1]} : vector<8x384xf32> to vector<8x128xf32>
    %18 = vector.extract_strided_slice %16 {offsets = [0, 0], sizes = [8, 128], strides = [1, 1]} : vector<8x384xf32> to vector<8x128xf32>
    %19 = arith.addf %17, %18 : vector<8x128xf32>
    %20 = arith.negf %19 : vector<8x128xf32>
    %21 = math.exp %20 : vector<8x128xf32>
    %cst_15 = arith.constant 1.000000e+00 : f32
    %22 = vector.broadcast %cst_15 : f32 to vector<8x128xf32>
    %23 = arith.addf %22, %21 : vector<8x128xf32>
    %24 = arith.divf %22, %23 : vector<8x128xf32>
    %25 = vector.extract_strided_slice %14 {offsets = [0, 128], sizes = [8, 128], strides = [1, 1]} : vector<8x384xf32> to vector<8x128xf32>
    %26 = vector.extract_strided_slice %16 {offsets = [0, 128], sizes = [8, 128], strides = [1, 1]} : vector<8x384xf32> to vector<8x128xf32>
    %27 = arith.addf %25, %26 : vector<8x128xf32>
    %28 = arith.negf %27 : vector<8x128xf32>
    %29 = math.exp %28 : vector<8x128xf32>
    %cst_16 = arith.constant 1.000000e+00 : f32
    %30 = vector.broadcast %cst_16 : f32 to vector<8x128xf32>
    %31 = arith.addf %30, %29 : vector<8x128xf32>
    %32 = arith.divf %30, %31 : vector<8x128xf32>
    %33 = vector.extract_strided_slice %14 {offsets = [0, 256], sizes = [8, 128], strides = [1, 1]} : vector<8x384xf32> to vector<8x128xf32>
    %34 = vector.extract_strided_slice %16 {offsets = [0, 256], sizes = [8, 128], strides = [1, 1]} : vector<8x384xf32> to vector<8x128xf32>
    %35 = vector.broadcast %9 : vector<1x128xf32> to vector<8x128xf32>
    %36 = arith.addf %34, %35 : vector<8x128xf32>
    %37 = arith.mulf %24, %36 : vector<8x128xf32>
    %38 = arith.addf %33, %37 : vector<8x128xf32>
    %39 = math.tanh %38 : vector<8x128xf32>
    %cst_17 = arith.constant 1.000000e+00 : f32
    %40 = vector.broadcast %cst_17 : f32 to vector<8x128xf32>
    %41 = arith.subf %40, %32 : vector<8x128xf32>
    %42 = arith.mulf %41, %39 : vector<8x128xf32>
    %43 = arith.mulf %32, %10 : vector<8x128xf32>
    %44 = arith.addf %42, %43 : vector<8x128xf32>
    %c1_i32 = arith.constant 1 : i32
    %c8_i32_18 = arith.constant 8 : i32
    %45 = arith.muli %c1_i32, %c8_i32_18 : i32
    %46 = tpu.assume_multiple %45, 8 : i32
    %47 = arith.index_cast %46 : i32 to index
    %c0_19 = arith.constant 0 : index
    %48 = vector.load %arg7[%47, %c0_19] : memref<64x384xf32, #tpu.memory_space<vmem>>, vector<8x384xf32>
    %49 = arith.truncf %44 : vector<8x128xf32> to vector<8x128xbf16>
    %cst_20 = arith.constant dense<0.000000e+00> : vector<8x384xf32>
    %50 = tpu.matmul %49, %8, %cst_20 {dimension_numbers = #tpu.dot_dimension_numbers<[1], [0], [0], [1], [0, 0, 1, 1], [], []>} : vector<8x128xbf16>, vector<128x384xbf16>, vector<8x384xf32> -> vector<8x384xf32>
    %51 = vector.extract_strided_slice %48 {offsets = [0, 0], sizes = [8, 128], strides = [1, 1]} : vector<8x384xf32> to vector<8x128xf32>
    %52 = vector.extract_strided_slice %50 {offsets = [0, 0], sizes = [8, 128], strides = [1, 1]} : vector<8x384xf32> to vector<8x128xf32>
    %53 = arith.addf %51, %52 : vector<8x128xf32>
    %54 = arith.negf %53 : vector<8x128xf32>
    %55 = math.exp %54 : vector<8x128xf32>
    %cst_21 = arith.constant 1.000000e+00 : f32
    %56 = vector.broadcast %cst_21 : f32 to vector<8x128xf32>
    %57 = arith.addf %56, %55 : vector<8x128xf32>
    %58 = arith.divf %56, %57 : vector<8x128xf32>
    %59 = vector.extract_strided_slice %48 {offsets = [0, 128], sizes = [8, 128], strides = [1, 1]} : vector<8x384xf32> to vector<8x128xf32>
    %60 = vector.extract_strided_slice %50 {offsets = [0, 128], sizes = [8, 128], strides = [1, 1]} : vector<8x384xf32> to vector<8x128xf32>
    %61 = arith.addf %59, %60 : vector<8x128xf32>
    %62 = arith.negf %61 : vector<8x128xf32>
    %63 = math.exp %62 : vector<8x128xf32>
    %cst_22 = arith.constant 1.000000e+00 : f32
    %64 = vector.broadcast %cst_22 : f32 to vector<8x128xf32>
    %65 = arith.addf %64, %63 : vector<8x128xf32>
    %66 = arith.divf %64, %65 : vector<8x128xf32>
    %67 = vector.extract_strided_slice %48 {offsets = [0, 256], sizes = [8, 128], strides = [1, 1]} : vector<8x384xf32> to vector<8x128xf32>
    %68 = vector.extract_strided_slice %50 {offsets = [0, 256], sizes = [8, 128], strides = [1, 1]} : vector<8x384xf32> to vector<8x128xf32>
    %69 = vector.broadcast %9 : vector<1x128xf32> to vector<8x128xf32>
    %70 = arith.addf %68, %69 : vector<8x128xf32>
    %71 = arith.mulf %58, %70 : vector<8x128xf32>
    %72 = arith.addf %67, %71 : vector<8x128xf32>
    %73 = math.tanh %72 : vector<8x128xf32>
    %cst_23 = arith.constant 1.000000e+00 : f32
    %74 = vector.broadcast %cst_23 : f32 to vector<8x128xf32>
    %75 = arith.subf %74, %66 : vector<8x128xf32>
    %76 = arith.mulf %75, %73 : vector<8x128xf32>
    %77 = arith.mulf %66, %44 : vector<8x128xf32>
    %78 = arith.addf %76, %77 : vector<8x128xf32>
    %c2_i32 = arith.constant 2 : i32
    %c8_i32_24 = arith.constant 8 : i32
    %79 = arith.muli %c2_i32, %c8_i32_24 : i32
    %80 = tpu.assume_multiple %79, 8 : i32
    %81 = arith.index_cast %80 : i32 to index
    %c0_25 = arith.constant 0 : index
    %82 = vector.load %arg7[%81, %c0_25] : memref<64x384xf32, #tpu.memory_space<vmem>>, vector<8x384xf32>
    %83 = arith.truncf %78 : vector<8x128xf32> to vector<8x128xbf16>
    %cst_26 = arith.constant dense<0.000000e+00> : vector<8x384xf32>
    %84 = tpu.matmul %83, %8, %cst_26 {dimension_numbers = #tpu.dot_dimension_numbers<[1], [0], [0], [1], [0, 0, 1, 1], [], []>} : vector<8x128xbf16>, vector<128x384xbf16>, vector<8x384xf32> -> vector<8x384xf32>
    %85 = vector.extract_strided_slice %82 {offsets = [0, 0], sizes = [8, 128], strides = [1, 1]} : vector<8x384xf32> to vector<8x128xf32>
    %86 = vector.extract_strided_slice %84 {offsets = [0, 0], sizes = [8, 128], strides = [1, 1]} : vector<8x384xf32> to vector<8x128xf32>
    %87 = arith.addf %85, %86 : vector<8x128xf32>
    %88 = arith.negf %87 : vector<8x128xf32>
    %89 = math.exp %88 : vector<8x128xf32>
    %cst_27 = arith.constant 1.000000e+00 : f32
    %90 = vector.broadcast %cst_27 : f32 to vector<8x128xf32>
    %91 = arith.addf %90, %89 : vector<8x128xf32>
    %92 = arith.divf %90, %91 : vector<8x128xf32>
    %93 = vector.extract_strided_slice %82 {offsets = [0, 128], sizes = [8, 128], strides = [1, 1]} : vector<8x384xf32> to vector<8x128xf32>
    %94 = vector.extract_strided_slice %84 {offsets = [0, 128], sizes = [8, 128], strides = [1, 1]} : vector<8x384xf32> to vector<8x128xf32>
    %95 = arith.addf %93, %94 : vector<8x128xf32>
    %96 = arith.negf %95 : vector<8x128xf32>
    %97 = math.exp %96 : vector<8x128xf32>
    %cst_28 = arith.constant 1.000000e+00 : f32
    %98 = vector.broadcast %cst_28 : f32 to vector<8x128xf32>
    %99 = arith.addf %98, %97 : vector<8x128xf32>
    %100 = arith.divf %98, %99 : vector<8x128xf32>
    %101 = vector.extract_strided_slice %82 {offsets = [0, 256], sizes = [8, 128], strides = [1, 1]} : vector<8x384xf32> to vector<8x128xf32>
    %102 = vector.extract_strided_slice %84 {offsets = [0, 256], sizes = [8, 128], strides = [1, 1]} : vector<8x384xf32> to vector<8x128xf32>
    %103 = vector.broadcast %9 : vector<1x128xf32> to vector<8x128xf32>
    %104 = arith.addf %102, %103 : vector<8x128xf32>
    %105 = arith.mulf %92, %104 : vector<8x128xf32>
    %106 = arith.addf %101, %105 : vector<8x128xf32>
    %107 = math.tanh %106 : vector<8x128xf32>
    %cst_29 = arith.constant 1.000000e+00 : f32
    %108 = vector.broadcast %cst_29 : f32 to vector<8x128xf32>
    %109 = arith.subf %108, %100 : vector<8x128xf32>
    %110 = arith.mulf %109, %107 : vector<8x128xf32>
    %111 = arith.mulf %100, %78 : vector<8x128xf32>
    %112 = arith.addf %110, %111 : vector<8x128xf32>
    %c3_i32 = arith.constant 3 : i32
    %c8_i32_30 = arith.constant 8 : i32
    %113 = arith.muli %c3_i32, %c8_i32_30 : i32
    %114 = tpu.assume_multiple %113, 8 : i32
    %115 = arith.index_cast %114 : i32 to index
    %c0_31 = arith.constant 0 : index
    %116 = vector.load %arg7[%115, %c0_31] : memref<64x384xf32, #tpu.memory_space<vmem>>, vector<8x384xf32>
    %117 = arith.truncf %112 : vector<8x128xf32> to vector<8x128xbf16>
    %cst_32 = arith.constant dense<0.000000e+00> : vector<8x384xf32>
    %118 = tpu.matmul %117, %8, %cst_32 {dimension_numbers = #tpu.dot_dimension_numbers<[1], [0], [0], [1], [0, 0, 1, 1], [], []>} : vector<8x128xbf16>, vector<128x384xbf16>, vector<8x384xf32> -> vector<8x384xf32>
    %119 = vector.extract_strided_slice %116 {offsets = [0, 0], sizes = [8, 128], strides = [1, 1]} : vector<8x384xf32> to vector<8x128xf32>
    %120 = vector.extract_strided_slice %118 {offsets = [0, 0], sizes = [8, 128], strides = [1, 1]} : vector<8x384xf32> to vector<8x128xf32>
    %121 = arith.addf %119, %120 : vector<8x128xf32>
    %122 = arith.negf %121 : vector<8x128xf32>
    %123 = math.exp %122 : vector<8x128xf32>
    %cst_33 = arith.constant 1.000000e+00 : f32
    %124 = vector.broadcast %cst_33 : f32 to vector<8x128xf32>
    %125 = arith.addf %124, %123 : vector<8x128xf32>
    %126 = arith.divf %124, %125 : vector<8x128xf32>
    %127 = vector.extract_strided_slice %116 {offsets = [0, 128], sizes = [8, 128], strides = [1, 1]} : vector<8x384xf32> to vector<8x128xf32>
    %128 = vector.extract_strided_slice %118 {offsets = [0, 128], sizes = [8, 128], strides = [1, 1]} : vector<8x384xf32> to vector<8x128xf32>
    %129 = arith.addf %127, %128 : vector<8x128xf32>
    %130 = arith.negf %129 : vector<8x128xf32>
    %131 = math.exp %130 : vector<8x128xf32>
    %cst_34 = arith.constant 1.000000e+00 : f32
    %132 = vector.broadcast %cst_34 : f32 to vector<8x128xf32>
    %133 = arith.addf %132, %131 : vector<8x128xf32>
    %134 = arith.divf %132, %133 : vector<8x128xf32>
    %135 = vector.extract_strided_slice %116 {offsets = [0, 256], sizes = [8, 128], strides = [1, 1]} : vector<8x384xf32> to vector<8x128xf32>
    %136 = vector.extract_strided_slice %118 {offsets = [0, 256], sizes = [8, 128], strides = [1, 1]} : vector<8x384xf32> to vector<8x128xf32>
    %137 = vector.broadcast %9 : vector<1x128xf32> to vector<8x128xf32>
    %138 = arith.addf %136, %137 : vector<8x128xf32>
    %139 = arith.mulf %126, %138 : vector<8x128xf32>
    %140 = arith.addf %135, %139 : vector<8x128xf32>
    %141 = math.tanh %140 : vector<8x128xf32>
    %cst_35 = arith.constant 1.000000e+00 : f32
    %142 = vector.broadcast %cst_35 : f32 to vector<8x128xf32>
    %143 = arith.subf %142, %134 : vector<8x128xf32>
    %144 = arith.mulf %143, %141 : vector<8x128xf32>
    %145 = arith.mulf %134, %112 : vector<8x128xf32>
    %146 = arith.addf %144, %145 : vector<8x128xf32>
    %c4_i32 = arith.constant 4 : i32
    %c8_i32_36 = arith.constant 8 : i32
    %147 = arith.muli %c4_i32, %c8_i32_36 : i32
    %148 = tpu.assume_multiple %147, 8 : i32
    %149 = arith.index_cast %148 : i32 to index
    %c0_37 = arith.constant 0 : index
    %150 = vector.load %arg7[%149, %c0_37] : memref<64x384xf32, #tpu.memory_space<vmem>>, vector<8x384xf32>
    %151 = arith.truncf %146 : vector<8x128xf32> to vector<8x128xbf16>
    %cst_38 = arith.constant dense<0.000000e+00> : vector<8x384xf32>
    %152 = tpu.matmul %151, %8, %cst_38 {dimension_numbers = #tpu.dot_dimension_numbers<[1], [0], [0], [1], [0, 0, 1, 1], [], []>} : vector<8x128xbf16>, vector<128x384xbf16>, vector<8x384xf32> -> vector<8x384xf32>
    %153 = vector.extract_strided_slice %150 {offsets = [0, 0], sizes = [8, 128], strides = [1, 1]} : vector<8x384xf32> to vector<8x128xf32>
    %154 = vector.extract_strided_slice %152 {offsets = [0, 0], sizes = [8, 128], strides = [1, 1]} : vector<8x384xf32> to vector<8x128xf32>
    %155 = arith.addf %153, %154 : vector<8x128xf32>
    %156 = arith.negf %155 : vector<8x128xf32>
    %157 = math.exp %156 : vector<8x128xf32>
    %cst_39 = arith.constant 1.000000e+00 : f32
    %158 = vector.broadcast %cst_39 : f32 to vector<8x128xf32>
    %159 = arith.addf %158, %157 : vector<8x128xf32>
    %160 = arith.divf %158, %159 : vector<8x128xf32>
    %161 = vector.extract_strided_slice %150 {offsets = [0, 128], sizes = [8, 128], strides = [1, 1]} : vector<8x384xf32> to vector<8x128xf32>
    %162 = vector.extract_strided_slice %152 {offsets = [0, 128], sizes = [8, 128], strides = [1, 1]} : vector<8x384xf32> to vector<8x128xf32>
    %163 = arith.addf %161, %162 : vector<8x128xf32>
    %164 = arith.negf %163 : vector<8x128xf32>
    %165 = math.exp %164 : vector<8x128xf32>
    %cst_40 = arith.constant 1.000000e+00 : f32
    %166 = vector.broadcast %cst_40 : f32 to vector<8x128xf32>
    %167 = arith.addf %166, %165 : vector<8x128xf32>
    %168 = arith.divf %166, %167 : vector<8x128xf32>
    %169 = vector.extract_strided_slice %150 {offsets = [0, 256], sizes = [8, 128], strides = [1, 1]} : vector<8x384xf32> to vector<8x128xf32>
    %170 = vector.extract_strided_slice %152 {offsets = [0, 256], sizes = [8, 128], strides = [1, 1]} : vector<8x384xf32> to vector<8x128xf32>
    %171 = vector.broadcast %9 : vector<1x128xf32> to vector<8x128xf32>
    %172 = arith.addf %170, %171 : vector<8x128xf32>
    %173 = arith.mulf %160, %172 : vector<8x128xf32>
    %174 = arith.addf %169, %173 : vector<8x128xf32>
    %175 = math.tanh %174 : vector<8x128xf32>
    %cst_41 = arith.constant 1.000000e+00 : f32
    %176 = vector.broadcast %cst_41 : f32 to vector<8x128xf32>
    %177 = arith.subf %176, %168 : vector<8x128xf32>
    %178 = arith.mulf %177, %175 : vector<8x128xf32>
    %179 = arith.mulf %168, %146 : vector<8x128xf32>
    %180 = arith.addf %178, %179 : vector<8x128xf32>
    %c5_i32 = arith.constant 5 : i32
    %c8_i32_42 = arith.constant 8 : i32
    %181 = arith.muli %c5_i32, %c8_i32_42 : i32
    %182 = tpu.assume_multiple %181, 8 : i32
    %183 = arith.index_cast %182 : i32 to index
    %c0_43 = arith.constant 0 : index
    %184 = vector.load %arg7[%183, %c0_43] : memref<64x384xf32, #tpu.memory_space<vmem>>, vector<8x384xf32>
    %185 = arith.truncf %180 : vector<8x128xf32> to vector<8x128xbf16>
    %cst_44 = arith.constant dense<0.000000e+00> : vector<8x384xf32>
    %186 = tpu.matmul %185, %8, %cst_44 {dimension_numbers = #tpu.dot_dimension_numbers<[1], [0], [0], [1], [0, 0, 1, 1], [], []>} : vector<8x128xbf16>, vector<128x384xbf16>, vector<8x384xf32> -> vector<8x384xf32>
    %187 = vector.extract_strided_slice %184 {offsets = [0, 0], sizes = [8, 128], strides = [1, 1]} : vector<8x384xf32> to vector<8x128xf32>
    %188 = vector.extract_strided_slice %186 {offsets = [0, 0], sizes = [8, 128], strides = [1, 1]} : vector<8x384xf32> to vector<8x128xf32>
    %189 = arith.addf %187, %188 : vector<8x128xf32>
    %190 = arith.negf %189 : vector<8x128xf32>
    %191 = math.exp %190 : vector<8x128xf32>
    %cst_45 = arith.constant 1.000000e+00 : f32
    %192 = vector.broadcast %cst_45 : f32 to vector<8x128xf32>
    %193 = arith.addf %192, %191 : vector<8x128xf32>
    %194 = arith.divf %192, %193 : vector<8x128xf32>
    %195 = vector.extract_strided_slice %184 {offsets = [0, 128], sizes = [8, 128], strides = [1, 1]} : vector<8x384xf32> to vector<8x128xf32>
    %196 = vector.extract_strided_slice %186 {offsets = [0, 128], sizes = [8, 128], strides = [1, 1]} : vector<8x384xf32> to vector<8x128xf32>
    %197 = arith.addf %195, %196 : vector<8x128xf32>
    %198 = arith.negf %197 : vector<8x128xf32>
    %199 = math.exp %198 : vector<8x128xf32>
    %cst_46 = arith.constant 1.000000e+00 : f32
    %200 = vector.broadcast %cst_46 : f32 to vector<8x128xf32>
    %201 = arith.addf %200, %199 : vector<8x128xf32>
    %202 = arith.divf %200, %201 : vector<8x128xf32>
    %203 = vector.extract_strided_slice %184 {offsets = [0, 256], sizes = [8, 128], strides = [1, 1]} : vector<8x384xf32> to vector<8x128xf32>
    %204 = vector.extract_strided_slice %186 {offsets = [0, 256], sizes = [8, 128], strides = [1, 1]} : vector<8x384xf32> to vector<8x128xf32>
    %205 = vector.broadcast %9 : vector<1x128xf32> to vector<8x128xf32>
    %206 = arith.addf %204, %205 : vector<8x128xf32>
    %207 = arith.mulf %194, %206 : vector<8x128xf32>
    %208 = arith.addf %203, %207 : vector<8x128xf32>
    %209 = math.tanh %208 : vector<8x128xf32>
    %cst_47 = arith.constant 1.000000e+00 : f32
    %210 = vector.broadcast %cst_47 : f32 to vector<8x128xf32>
    %211 = arith.subf %210, %202 : vector<8x128xf32>
    %212 = arith.mulf %211, %209 : vector<8x128xf32>
    %213 = arith.mulf %202, %180 : vector<8x128xf32>
    %214 = arith.addf %212, %213 : vector<8x128xf32>
    %c6_i32 = arith.constant 6 : i32
    %c8_i32_48 = arith.constant 8 : i32
    %215 = arith.muli %c6_i32, %c8_i32_48 : i32
    %216 = tpu.assume_multiple %215, 8 : i32
    %217 = arith.index_cast %216 : i32 to index
    %c0_49 = arith.constant 0 : index
    %218 = vector.load %arg7[%217, %c0_49] : memref<64x384xf32, #tpu.memory_space<vmem>>, vector<8x384xf32>
    %219 = arith.truncf %214 : vector<8x128xf32> to vector<8x128xbf16>
    %cst_50 = arith.constant dense<0.000000e+00> : vector<8x384xf32>
    %220 = tpu.matmul %219, %8, %cst_50 {dimension_numbers = #tpu.dot_dimension_numbers<[1], [0], [0], [1], [0, 0, 1, 1], [], []>} : vector<8x128xbf16>, vector<128x384xbf16>, vector<8x384xf32> -> vector<8x384xf32>
    %221 = vector.extract_strided_slice %218 {offsets = [0, 0], sizes = [8, 128], strides = [1, 1]} : vector<8x384xf32> to vector<8x128xf32>
    %222 = vector.extract_strided_slice %220 {offsets = [0, 0], sizes = [8, 128], strides = [1, 1]} : vector<8x384xf32> to vector<8x128xf32>
    %223 = arith.addf %221, %222 : vector<8x128xf32>
    %224 = arith.negf %223 : vector<8x128xf32>
    %225 = math.exp %224 : vector<8x128xf32>
    %cst_51 = arith.constant 1.000000e+00 : f32
    %226 = vector.broadcast %cst_51 : f32 to vector<8x128xf32>
    %227 = arith.addf %226, %225 : vector<8x128xf32>
    %228 = arith.divf %226, %227 : vector<8x128xf32>
    %229 = vector.extract_strided_slice %218 {offsets = [0, 128], sizes = [8, 128], strides = [1, 1]} : vector<8x384xf32> to vector<8x128xf32>
    %230 = vector.extract_strided_slice %220 {offsets = [0, 128], sizes = [8, 128], strides = [1, 1]} : vector<8x384xf32> to vector<8x128xf32>
    %231 = arith.addf %229, %230 : vector<8x128xf32>
    %232 = arith.negf %231 : vector<8x128xf32>
    %233 = math.exp %232 : vector<8x128xf32>
    %cst_52 = arith.constant 1.000000e+00 : f32
    %234 = vector.broadcast %cst_52 : f32 to vector<8x128xf32>
    %235 = arith.addf %234, %233 : vector<8x128xf32>
    %236 = arith.divf %234, %235 : vector<8x128xf32>
    %237 = vector.extract_strided_slice %218 {offsets = [0, 256], sizes = [8, 128], strides = [1, 1]} : vector<8x384xf32> to vector<8x128xf32>
    %238 = vector.extract_strided_slice %220 {offsets = [0, 256], sizes = [8, 128], strides = [1, 1]} : vector<8x384xf32> to vector<8x128xf32>
    %239 = vector.broadcast %9 : vector<1x128xf32> to vector<8x128xf32>
    %240 = arith.addf %238, %239 : vector<8x128xf32>
    %241 = arith.mulf %228, %240 : vector<8x128xf32>
    %242 = arith.addf %237, %241 : vector<8x128xf32>
    %243 = math.tanh %242 : vector<8x128xf32>
    %cst_53 = arith.constant 1.000000e+00 : f32
    %244 = vector.broadcast %cst_53 : f32 to vector<8x128xf32>
    %245 = arith.subf %244, %236 : vector<8x128xf32>
    %246 = arith.mulf %245, %243 : vector<8x128xf32>
    %247 = arith.mulf %236, %214 : vector<8x128xf32>
    %248 = arith.addf %246, %247 : vector<8x128xf32>
    %c7_i32 = arith.constant 7 : i32
    %c8_i32_54 = arith.constant 8 : i32
    %249 = arith.muli %c7_i32, %c8_i32_54 : i32
    %250 = tpu.assume_multiple %249, 8 : i32
    %251 = arith.index_cast %250 : i32 to index
    %c0_55 = arith.constant 0 : index
    %252 = vector.load %arg7[%251, %c0_55] : memref<64x384xf32, #tpu.memory_space<vmem>>, vector<8x384xf32>
    %253 = arith.truncf %248 : vector<8x128xf32> to vector<8x128xbf16>
    %cst_56 = arith.constant dense<0.000000e+00> : vector<8x384xf32>
    %254 = tpu.matmul %253, %8, %cst_56 {dimension_numbers = #tpu.dot_dimension_numbers<[1], [0], [0], [1], [0, 0, 1, 1], [], []>} : vector<8x128xbf16>, vector<128x384xbf16>, vector<8x384xf32> -> vector<8x384xf32>
    %255 = vector.extract_strided_slice %252 {offsets = [0, 0], sizes = [8, 128], strides = [1, 1]} : vector<8x384xf32> to vector<8x128xf32>
    %256 = vector.extract_strided_slice %254 {offsets = [0, 0], sizes = [8, 128], strides = [1, 1]} : vector<8x384xf32> to vector<8x128xf32>
    %257 = arith.addf %255, %256 : vector<8x128xf32>
    %258 = arith.negf %257 : vector<8x128xf32>
    %259 = math.exp %258 : vector<8x128xf32>
    %cst_57 = arith.constant 1.000000e+00 : f32
    %260 = vector.broadcast %cst_57 : f32 to vector<8x128xf32>
    %261 = arith.addf %260, %259 : vector<8x128xf32>
    %262 = arith.divf %260, %261 : vector<8x128xf32>
    %263 = vector.extract_strided_slice %252 {offsets = [0, 128], sizes = [8, 128], strides = [1, 1]} : vector<8x384xf32> to vector<8x128xf32>
    %264 = vector.extract_strided_slice %254 {offsets = [0, 128], sizes = [8, 128], strides = [1, 1]} : vector<8x384xf32> to vector<8x128xf32>
    %265 = arith.addf %263, %264 : vector<8x128xf32>
    %266 = arith.negf %265 : vector<8x128xf32>
    %267 = math.exp %266 : vector<8x128xf32>
    %cst_58 = arith.constant 1.000000e+00 : f32
    %268 = vector.broadcast %cst_58 : f32 to vector<8x128xf32>
    %269 = arith.addf %268, %267 : vector<8x128xf32>
    %270 = arith.divf %268, %269 : vector<8x128xf32>
    %271 = vector.extract_strided_slice %252 {offsets = [0, 256], sizes = [8, 128], strides = [1, 1]} : vector<8x384xf32> to vector<8x128xf32>
    %272 = vector.extract_strided_slice %254 {offsets = [0, 256], sizes = [8, 128], strides = [1, 1]} : vector<8x384xf32> to vector<8x128xf32>
    %273 = vector.broadcast %9 : vector<1x128xf32> to vector<8x128xf32>
    %274 = arith.addf %272, %273 : vector<8x128xf32>
    %275 = arith.mulf %262, %274 : vector<8x128xf32>
    %276 = arith.addf %271, %275 : vector<8x128xf32>
    %277 = math.tanh %276 : vector<8x128xf32>
    %cst_59 = arith.constant 1.000000e+00 : f32
    %278 = vector.broadcast %cst_59 : f32 to vector<8x128xf32>
    %279 = arith.subf %278, %270 : vector<8x128xf32>
    %280 = arith.mulf %279, %277 : vector<8x128xf32>
    %281 = arith.mulf %270, %248 : vector<8x128xf32>
    %282 = arith.addf %280, %281 : vector<8x128xf32>
    %c8_i32_60 = arith.constant 8 : i32
    %c0_61 = arith.constant 0 : index
    %c0_62 = arith.constant 0 : index
    %283 = vector.load %arg6[%c0_61, %c0_62] : memref<8x128xf32, #tpu.memory_space<vmem>>, vector<8x128xf32>
    tpu.vector_store %arg6[%c0_61, %c0_62], %282 {strides = array<i32>} : memref<8x128xf32, #tpu.memory_space<vmem>>, vector<8x128xf32>,
    return
  }
  func.func @transform_0(%arg0: i32) -> (i32, i32, i32) {
    %c0_i32 = arith.constant 0 : i32
    %c0_i32_0 = arith.constant 0 : i32
    %c0_i32_1 = arith.constant 0 : i32
    return %arg0, %c0_i32, %c0_i32_0 : i32, i32, i32
  }
  func.func @transform_1(%arg0: i32) -> (i32, i32) {
    %c0_i32 = arith.constant 0 : i32
    %c0_i32_0 = arith.constant 0 : i32
    %c0_i32_1 = arith.constant 0 : i32
    return %c0_i32, %c0_i32_0 : i32, i32
  }
  func.func @transform_2(%arg0: i32) -> (i32, i32) {
    %c0_i32 = arith.constant 0 : i32
    %c0_i32_0 = arith.constant 0 : i32
    %c0_i32_1 = arith.constant 0 : i32
    return %c0_i32, %c0_i32_0 : i32, i32
  }
  func.func @transform_3(%arg0: i32) -> (i32, i32) {
    %c0_i32 = arith.constant 0 : i32
    %c0_i32_0 = arith.constant 0 : i32
    %c0_i32_1 = arith.constant 0 : i32
    return %c0_i32, %c0_i32_0 : i32, i32
  }
  func.func @transform_4(%arg0: i32) -> (i32, i32) {
    %c0_i32 = arith.constant 0 : i32
    %c0_i32_0 = arith.constant 0 : i32
    %c0_i32_1 = arith.constant 0 : i32
    return %c0_i32, %c0_i32_0 : i32, i32
  }
  func.func @transform_5(%arg0: i32) -> (i32, i32) {
    %c0_i32 = arith.constant 0 : i32
    %c0_i32_0 = arith.constant 0 : i32
    return %arg0, %c0_i32 : i32, i32
  }
}

</mosaic_0001>

<llo_original>
// kernel: tpu_custom_call.1
$region0: #{tpu_custom_call.1}
  #allocation0 [shape = 'u32[]', space=smem, size = 0x4, offset = 0x4, fixed_abs, tag = 'smem constant byte address 0x4 - core index']
  #allocation1 [shape = 'u32[144,128]{1,0:T(1,128)}', space=vmem, size = 0x12000, scoped, tag = 'internal scratch']
  #allocation2 [shape = 'f32[64,384]{1,0:T(8,128)}', space=vmem, size = 0x18000, scoped, tag = 'scratch operand']
  %s0 = inlined_call_operand.hbm [shape: bf16[1,64,128], index: 0, kind: input, shape index: {}]
  %s1 = inlined_call_operand.hbm [shape: bf16[128,384], index: 1, kind: input, shape index: {}]
  %s2 = inlined_call_operand.hbm [shape: bf16[128,384], index: 2, kind: input, shape index: {}]
  %s3 = inlined_call_operand.vmem [shape: f32[1,384], index: 3, kind: input, shape index: {}]
  %s4 = inlined_call_operand.vmem [shape: f32[1,128], index: 4, kind: input, shape index: {}]
  %s5 = inlined_call_operand.hbm [shape: f32[8,128], index: 5, kind: output, shape index: {}]
  %s6 = sld [smem:[#allocation0]]
  $region42: #{tpu_custom_call.1} parent=0
    _
  %s8 = ssub.s32 1, %s6
  %s9 = scalar_select 0, %s8, %s6
  $region1: #{tpu_custom_call.1} parent=0
    #allocation3 [shape = 'u8[16384]{0}', space=vmem, size = 0x4000, scoped, tag = 'input window, operand 0, single buffered']
    #allocation4 [shape = 's32[1]{0}', space=sflag, size = 0x4, scoped, tag = 'scoped memory for tpu_custom_call.1']
    #allocation5 [shape = 's32[1]{0}', space=sflag, size = 0x4, scoped, tag = 'scoped memory for tpu_custom_call.1']
    #allocation6 [shape = 'u8[98304]{0}', space=vmem, size = 0x18000, scoped, tag = 'input window, operand 1, single buffered']
    #allocation7 [shape = 's32[1]{0}', space=sflag, size = 0x4, scoped, tag = 'scoped memory for tpu_custom_call.1']
    #allocation8 [shape = 'u8[98304]{0}', space=vmem, size = 0x18000, scoped, tag = 'input window, operand 2, single buffered']
    #allocation9 [shape = 'u8[4096]{0}', space=vmem, size = 0x1000, scoped, tag = 'output window, operand 0, single buffered']
    %10 = vsyncpa [#allocation4], 0
    %11 = vsyncpa [#allocation7], 0
    %12 = vsyncpa [#allocation5], 0
    // Predicated region
    $region2: #{tpu_custom_call.1} parent=1 // pred_check
      _
    $region3: #{tpu_custom_call.1} parent=1 // pred_check_branch
      %14 = sbr.rel (0) target = $region5
    $region4: #{tpu_custom_call.1} parent=1 // pred_region
      %s16 = ssub.s32 512, 512
      %17 = vsyncadd [#allocation4], %s16
      %s18 = sshll.u32 [#allocation3], 4
      %s19 = int_to_ptr.vmem [resolvable:$true] %s18
      %24 = dma.hbm_to_vmem [thread:$0]  %s0, 512, %s19, [#allocation4], 64, 64, 4
    $region5: #{tpu_custom_call.1} parent=1 // pred_fallthru
      _
    // Predicated region
    $region6: #{tpu_custom_call.1} parent=1 // pred_check
      _
    $region7: #{tpu_custom_call.1} parent=1 // pred_check_branch
      %26 = sbr.rel (0) target = $region9
    $region8: #{tpu_custom_call.1} parent=1 // pred_region
      %s28 = ssub.s32 3072, 3072
      %29 = vsyncadd [#allocation7], %s28
      %s30 = sshll.u32 [#allocation6], 4
      %s31 = int_to_ptr.vmem [resolvable:$true] %s30
      %36 = dma.hbm_to_vmem [thread:$0]  %s1, 3072, %s31, [#allocation7], 192, 192, 12
    $region9: #{tpu_custom_call.1} parent=1 // pred_fallthru
      _
    // Predicated region
    $region10: #{tpu_custom_call.1} parent=1 // pred_check
      _
    $region11: #{tpu_custom_call.1} parent=1 // pred_check_branch
      %38 = sbr.rel (0) target = $region13
    $region12: #{tpu_custom_call.1} parent=1 // pred_region
      %s40 = ssub.s32 3072, 3072
      %41 = vsyncadd [#allocation7], %s40
      %s42 = sshll.u32 [#allocation8], 4
      %s43 = int_to_ptr.vmem [resolvable:$true] %s42
      %48 = dma.hbm_to_vmem [thread:$0]  %s2, 3072, %s43, [#allocation7], 192, 192, 12
    $region13: #{tpu_custom_call.1} parent=1 // pred_fallthru
      _
    // Predicated region
    $region14: #{tpu_custom_call.1} parent=1 // pred_check
      _
    $region15: #{tpu_custom_call.1} parent=1 // pred_check_branch
      %50 = sbr.rel (0) target = $region17
    $region16: #{tpu_custom_call.1} parent=1 // pred_region
      _
    $region17: #{tpu_custom_call.1} parent=1 // pred_fallthru
      _
    // Predicated region
    $region18: #{tpu_custom_call.1} parent=1 // pred_check
      _
    $region19: #{tpu_custom_call.1} parent=1 // pred_check_branch
      %52 = sbr.rel (0) target = $region21
    $region20: #{tpu_custom_call.1} parent=1 // pred_region
      _
    $region21: #{tpu_custom_call.1} parent=1 // pred_fallthru
      _
    // Predicated region
    $region22: #{tpu_custom_call.1} parent=1 // pred_check
      _
    $region23: #{tpu_custom_call.1} parent=1 // pred_check_branch
      %54 = sbr.rel (0) target = $region25
    $region24: #{tpu_custom_call.1} parent=1 // pred_region
      %55 = dma.done [#allocation4], 512
    $region25: #{tpu_custom_call.1} parent=1 // pred_fallthru
      _
    // Predicated region
    $region26: #{tpu_custom_call.1} parent=1 // pred_check
      _
    $region27: #{tpu_custom_call.1} parent=1 // pred_check_branch
      %57 = sbr.rel (0) target = $region29
    $region28: #{tpu_custom_call.1} parent=1 // pred_region
      %58 = dma.done [#allocation7], 3072
    $region29: #{tpu_custom_call.1} parent=1 // pred_fallthru
      _
    // Predicated region
    $region30: #{tpu_custom_call.1} parent=1 // pred_check
      _
    $region31: #{tpu_custom_call.1} parent=1 // pred_check_branch
      %60 = sbr.rel (0) target = $region33
    $region32: #{tpu_custom_call.1} parent=1 // pred_region
      %61 = dma.done [#allocation7], 3072
    $region33: #{tpu_custom_call.1} parent=1 // pred_fallthru
      _
    %v63 = vld [vmem:[#allocation3] sm:$0xf]
    %v64 = vld [vmem:[#allocation3 + $0x4] sm:$0xf]
    %v65 = vld [vmem:[#allocation3 + $0x8] sm:$0xf]
    %v66 = vld [vmem:[#allocation3 + $0xc] sm:$0xf]
    %v67 = vld [vmem:[#allocation3 + $0x10] sm:$0xf]
    %v68 = vld [vmem:[#allocation3 + $0x14] sm:$0xf]
    %v69 = vld [vmem:[#allocation3 + $0x18] sm:$0xf]
    %v70 = vld [vmem:[#allocation3 + $0x1c] sm:$0xf]
    %v71 = vld [vmem:[#allocation6] sm:$0xff]
    %v72 = vld [vmem:[#allocation6 + $0x8] sm:$0xf]
    %v73 = vld [vmem:[#allocation6 + $0xc] sm:$0xff]
    %v74 = vld [vmem:[#allocation6 + $0x14] sm:$0xf]
    %v75 = vld [vmem:[#allocation6 + $0x18] sm:$0xff]
    %v76 = vld [vmem:[#allocation6 + $0x20] sm:$0xf]
    %v77 = vld [vmem:[#allocation6 + $0x24] sm:$0xff]
    %v78 = vld [vmem:[#allocation6 + $0x2c] sm:$0xf]
    %v79 = vld [vmem:[#allocation6 + $0x30] sm:$0xff]
    %v80 = vld [vmem:[#allocation6 + $0x38] sm:$0xf]
    %v81 = vld [vmem:[#allocation6 + $0x3c] sm:$0xff]
    %v82 = vld [vmem:[#allocation6 + $0x44] sm:$0xf]
    %v83 = vld [vmem:[#allocation6 + $0x48] sm:$0xff]
    %v84 = vld [vmem:[#allocation6 + $0x50] sm:$0xf]
    %v85 = vld [vmem:[#allocation6 + $0x54] sm:$0xff]
    %v86 = vld [vmem:[#allocation6 + $0x5c] sm:$0xf]
    %v87 = vld [vmem:[#allocation6 + $0x60] sm:$0xff]
    %v88 = vld [vmem:[#allocation6 + $0x68] sm:$0xf]
    %v89 = vld [vmem:[#allocation6 + $0x6c] sm:$0xff]
    %v90 = vld [vmem:[#allocation6 + $0x74] sm:$0xf]
    %v91 = vld [vmem:[#allocation6 + $0x78] sm:$0xff]
    %v92 = vld [vmem:[#allocation6 + $0x80] sm:$0xf]
    %v93 = vld [vmem:[#allocation6 + $0x84] sm:$0xff]
    %v94 = vld [vmem:[#allocation6 + $0x8c] sm:$0xf]
    %v95 = vld [vmem:[#allocation6 + $0x90] sm:$0xff]
    %v96 = vld [vmem:[#allocation6 + $0x98] sm:$0xf]
    %v97 = vld [vmem:[#allocation6 + $0x9c] sm:$0xff]
    %v98 = vld [vmem:[#allocation6 + $0xa4] sm:$0xf]
    %v99 = vld [vmem:[#allocation6 + $0xa8] sm:$0xff]
    %v100 = vld [vmem:[#allocation6 + $0xb0] sm:$0xf]
    %v101 = vld [vmem:[#allocation6 + $0xb4] sm:$0xff]
    %v102 = vld [vmem:[#allocation6 + $0xbc] sm:$0xf]
    %v103 = vld [vmem:[%s3] sm:$0x7]
    %v105 = vlaneseq
    %v106 = vshrl.u32 %v105, 7
    %v107 = vsub.s32 0, %v106
    %v108 = vrot.slane %v103, %v107
    %v109 = vlaneseq
    %v110 = vshrl.u32 %v109, 7
    %v111 = vsub.s32 1, %v110
    %v112 = vrot.slane %v103, %v111
    %v113 = vlaneseq
    %v114 = vshrl.u32 %v113, 7
    %v115 = vsub.s32 2, %v114
    %v116 = vrot.slane %v103, %v115
    %v128 = vunpack.c.l.b16 %v63
    %v129 = vunpack.c.l.b16 %v64
    %v130 = vunpack.c.l.b16 %v65
    %v131 = vunpack.c.l.b16 %v66
    %v132 = vunpack.c.l.b16 %v67
    %v133 = vunpack.c.l.b16 %v68
    %v134 = vunpack.c.l.b16 %v69
    %v135 = vunpack.c.l.b16 %v70
    %v136 = vpack.c.b16 %v129, %v128
    %v137 = vpack.c.b16 %v131, %v130
    %v138 = vpack.c.b16 %v133, %v132
    %v139 = vpack.c.b16 %v135, %v134
    %v176 = vunpack.c.l.b16 %v71
    %v177 = vunpack.c.h.b16 %v71
    %v178 = vunpack.c.l.b16 %v72
    %v179 = vunpack.c.l.b16 %v73
    %v180 = vunpack.c.h.b16 %v73
    %v181 = vunpack.c.l.b16 %v74
    %v182 = vunpack.c.l.b16 %v75
    %v183 = vunpack.c.h.b16 %v75
    %v184 = vunpack.c.l.b16 %v76
    %v185 = vunpack.c.l.b16 %v77
    %v186 = vunpack.c.h.b16 %v77
    %v187 = vunpack.c.l.b16 %v78
    %v188 = vunpack.c.l.b16 %v79
    %v189 = vunpack.c.h.b16 %v79
    %v190 = vunpack.c.l.b16 %v80
    %v191 = vunpack.c.l.b16 %v81
    %v192 = vunpack.c.h.b16 %v81
    %v193 = vunpack.c.l.b16 %v82
    %v194 = vunpack.c.l.b16 %v83
    %v195 = vunpack.c.h.b16 %v83
    %v196 = vunpack.c.l.b16 %v84
    %v197 = vunpack.c.l.b16 %v85
    %v198 = vunpack.c.h.b16 %v85
    %v199 = vunpack.c.l.b16 %v86
    %v200 = vunpack.c.l.b16 %v87
    %v201 = vunpack.c.h.b16 %v87
    %v202 = vunpack.c.l.b16 %v88
    %v203 = vunpack.c.l.b16 %v89
    %v204 = vunpack.c.h.b16 %v89
    %v205 = vunpack.c.l.b16 %v90
    %v206 = vunpack.c.l.b16 %v91
    %v207 = vunpack.c.h.b16 %v91
    %v208 = vunpack.c.l.b16 %v92
    %v209 = vunpack.c.l.b16 %v93
    %v210 = vunpack.c.h.b16 %v93
    %v211 = vunpack.c.l.b16 %v94
    %v212 = vunpack.c.l.b16 %v95
    %v213 = vunpack.c.h.b16 %v95
    %v214 = vunpack.c.l.b16 %v96
    %v215 = vunpack.c.l.b16 %v97
    %v216 = vunpack.c.h.b16 %v97
    %v217 = vunpack.c.l.b16 %v98
    %v218 = vunpack.c.l.b16 %v99
    %v219 = vunpack.c.h.b16 %v99
    %v220 = vunpack.c.l.b16 %v100
    %v221 = vunpack.c.l.b16 %v101
    %v222 = vunpack.c.h.b16 %v101
    %v223 = vunpack.c.l.b16 %v102
    %v224 = vpack.c.b16 %v179, %v176
    %v225 = vpack.c.b16 %v180, %v177
    %v226 = vpack.c.b16 %v181, %v178
    %v227 = vpack.c.b16 %v185, %v182
    %v228 = vpack.c.b16 %v186, %v183
    %v229 = vpack.c.b16 %v187, %v184
    %v230 = vpack.c.b16 %v191, %v188
    %v231 = vpack.c.b16 %v192, %v189
    %v232 = vpack.c.b16 %v193, %v190
    %v233 = vpack.c.b16 %v197, %v194
    %v234 = vpack.c.b16 %v198, %v195
    %v235 = vpack.c.b16 %v199, %v196
    %v236 = vpack.c.b16 %v203, %v200
    %v237 = vpack.c.b16 %v204, %v201
    %v238 = vpack.c.b16 %v205, %v202
    %v239 = vpack.c.b16 %v209, %v206
    %v240 = vpack.c.b16 %v210, %v207
    %v241 = vpack.c.b16 %v211, %v208
    %v242 = vpack.c.b16 %v215, %v212
    %v243 = vpack.c.b16 %v216, %v213
    %v244 = vpack.c.b16 %v217, %v214
    %v245 = vpack.c.b16 %v221, %v218
    %v246 = vpack.c.b16 %v222, %v219
    %v247 = vpack.c.b16 %v223, %v220
    %272 = vmatprep.subr.bf16.mxu0 %v225
    %273 = vmatpush1.bf16.msra.mxu0 %v224
    %274 = vmatprep.subr.bf16.mxu0 %v228
    %275 = vmatpush1.bf16.msra.mxu0 %v227
    %276 = vmatprep.subr.bf16.mxu0 %v231
    %277 = vmatpush1.bf16.msra.mxu0 %v230
    %278 = vmatprep.subr.bf16.mxu0 %v234
    %279 = vmatpush1.bf16.msra.mxu0 %v233
    %280 = vmatprep.subr.bf16.mxu0 %v237
    %281 = vmatpush1.bf16.msra.mxu0 %v236
    %282 = vmatprep.subr.bf16.mxu0 %v240
    %283 = vmatpush1.bf16.msra.mxu0 %v239
    %284 = vmatprep.subr.bf16.mxu0 %v243
    %285 = vmatpush1.bf16.msra.mxu0 %v242
    %286 = vmatprep.subr.bf16.mxu0 %v246
    %287 = vmatpush1.bf16.msra.mxu0 %v245
    %288 = vmatprep.subr.bf16.mxu0 0
    %289 = vmatpush1.bf16.msra.mxu0 0
    %290 = vmatprep.subr.bf16.mxu0 0
    %291 = vmatpush1.bf16.msra.mxu0 0
    %292 = vmatprep.subr.bf16.mxu0 0
    %293 = vmatpush1.bf16.msra.mxu0 0
    %294 = vmatprep.subr.bf16.mxu0 0
    %295 = vmatpush1.bf16.msra.mxu0 0
    %296 = vmatprep.subr.bf16.mxu0 0
    %297 = vmatpush1.bf16.msra.mxu0 0
    %298 = vmatprep.subr.bf16.mxu0 0
    %299 = vmatpush1.bf16.msra.mxu0 0
    %300 = vmatprep.subr.bf16.mxu0 0
    %301 = vmatpush1.bf16.msra.mxu0 0
    %302 = vmatprep.subr.bf16.mxu0 0
    %303 = vmatpush1.bf16.msra.mxu0 0
    %304 = vmatprep.mubr.bf16.mxu0 0
    %305 = vmatmul.mubr.bf16.gmra.mrb[0].mxu0 %v136
    %v306 = vpop.f32.mrb[0].mxu0
    %v307 = vadd.f32 %v108, %v306
    %v308 = vpop.f32.mrb[0].mxu0
    %v309 = vadd.f32 %v112, %v308
    %v310 = vpop.f32.mrb[0].mxu0
    %v311 = vadd.f32 %v108, %v310
    %v312 = vpop.f32.mrb[0].mxu0
    %v313 = vadd.f32 %v112, %v312
    %314 = vmatprep.mubr.bf16.mxu0 0
    %315 = vmatmul.mubr.bf16.gmra.mrb[0].mxu0 %v137
    %v316 = vpop.f32.mrb[0].mxu0
    %v317 = vadd.f32 %v108, %v316
    %v318 = vpop.f32.mrb[0].mxu0
    %v319 = vadd.f32 %v112, %v318
    %v320 = vpop.f32.mrb[0].mxu0
    %v321 = vadd.f32 %v108, %v320
    %v322 = vpop.f32.mrb[0].mxu0
    %v323 = vadd.f32 %v112, %v322
    %324 = vmatprep.mubr.bf16.mxu0 0
    %325 = vmatmul.mubr.bf16.gmra.mrb[0].mxu0 %v138
    %v326 = vpop.f32.mrb[0].mxu0
    %v327 = vadd.f32 %v108, %v326
    %v328 = vpop.f32.mrb[0].mxu0
    %v329 = vadd.f32 %v112, %v328
    %v330 = vpop.f32.mrb[0].mxu0
    %v331 = vadd.f32 %v108, %v330
    %v332 = vpop.f32.mrb[0].mxu0
    %v333 = vadd.f32 %v112, %v332
    %334 = vmatprep.mubr.bf16.mxu0 0
    %335 = vmatmul.mubr.bf16.gmra.mrb[0].mxu0 %v139
    %v336 = vpop.f32.mrb[0].mxu0
    %v337 = vadd.f32 %v108, %v336
    %v338 = vpop.f32.mrb[0].mxu0
    %v339 = vadd.f32 %v112, %v338
    %v340 = vpop.f32.mrb[0].mxu0
    %v341 = vadd.f32 %v108, %v340
    %v342 = vpop.f32.mrb[0].mxu0
    %v343 = vadd.f32 %v112, %v342
    %344 = vdwg.mxu0
    %345 = vmatprep.subr.bf16.mxu0 0
    %346 = vmatpush1.bf16.msra.mxu0 %v226
    %347 = vmatprep.subr.bf16.mxu0 0
    %348 = vmatpush1.bf16.msra.mxu0 %v229
    %349 = vmatprep.subr.bf16.mxu0 0
    %350 = vmatpush1.bf16.msra.mxu0 %v232
    %351 = vmatprep.subr.bf16.mxu0 0
    %352 = vmatpush1.bf16.msra.mxu0 %v235
    %353 = vmatprep.subr.bf16.mxu0 0
    %354 = vmatpush1.bf16.msra.mxu0 %v238
    %355 = vmatprep.subr.bf16.mxu0 0
    %356 = vmatpush1.bf16.msra.mxu0 %v241
    %357 = vmatprep.subr.bf16.mxu0 0
    %358 = vmatpush1.bf16.msra.mxu0 %v244
    %359 = vmatprep.subr.bf16.mxu0 0
    %360 = vmatpush1.bf16.msra.mxu0 %v247
    %361 = vmatprep.subr.bf16.mxu0 0
    %362 = vmatpush1.bf16.msra.mxu0 0
    %363 = vmatprep.subr.bf16.mxu0 0
    %364 = vmatpush1.bf16.msra.mxu0 0
    %365 = vmatprep.subr.bf16.mxu0 0
    %366 = vmatpush1.bf16.msra.mxu0 0
    %367 = vmatprep.subr.bf16.mxu0 0
    %368 = vmatpush1.bf16.msra.mxu0 0
    %369 = vmatprep.subr.bf16.mxu0 0
    %370 = vmatpush1.bf16.msra.mxu0 0
    %371 = vmatprep.subr.bf16.mxu0 0
    %372 = vmatpush1.bf16.msra.mxu0 0
    %373 = vmatprep.subr.bf16.mxu0 0
    %374 = vmatpush1.bf16.msra.mxu0 0
    %375 = vmatprep.subr.bf16.mxu0 0
    %376 = vmatpush1.bf16.msra.mxu0 0
    %377 = vmatprep.mubr.bf16.mxu0 0
    %378 = vmatmul.mubr.bf16.gmra.mrb[0].mxu0 %v136
    %v379 = vpop.f32.mrb[0].mxu0
    %v380 = vadd.f32 %v116, %v379
    %v381 = vpop.f32.mrb[0].mxu0
    %v382 = vpop.f32.mrb[0].mxu0
    %v383 = vadd.f32 %v116, %v382
    %v384 = vpop.f32.mrb[0].mxu0
    %385 = vmatprep.mubr.bf16.mxu0 0
    %386 = vmatmul.mubr.bf16.gmra.mrb[0].mxu0 %v137
    %v387 = vpop.f32.mrb[0].mxu0
    %v388 = vadd.f32 %v116, %v387
    %v389 = vpop.f32.mrb[0].mxu0
    %v390 = vpop.f32.mrb[0].mxu0
    %v391 = vadd.f32 %v116, %v390
    %v392 = vpop.f32.mrb[0].mxu0
    %393 = vmatprep.mubr.bf16.mxu0 0
    %394 = vmatmul.mubr.bf16.gmra.mrb[0].mxu0 %v138
    %v395 = vpop.f32.mrb[0].mxu0
    %v396 = vadd.f32 %v116, %v395
    %v397 = vpop.f32.mrb[0].mxu0
    %v398 = vpop.f32.mrb[0].mxu0
    %v399 = vadd.f32 %v116, %v398
    %v400 = vpop.f32.mrb[0].mxu0
    %401 = vmatprep.mubr.bf16.mxu0 0
    %402 = vmatmul.mubr.bf16.gmra.mrb[0].mxu0 %v139
    %v403 = vpop.f32.mrb[0].mxu0
    %v404 = vadd.f32 %v116, %v403
    %v405 = vpop.f32.mrb[0].mxu0
    %v406 = vpop.f32.mrb[0].mxu0
    %v407 = vadd.f32 %v116, %v406
    %v408 = vpop.f32.mrb[0].mxu0
    %409 = vdwg.mxu0
    %410 = vst [vmem:[#allocation2] sm:$0xff] %v307
    %411 = vst [vmem:[#allocation2 + $0x8] sm:$0xff] %v309
    %412 = vst [vmem:[#allocation2 + $0x10] sm:$0xff] %v380
    %413 = vst [vmem:[#allocation2 + $0x18] sm:$0xff] %v311
    %414 = vst [vmem:[#allocation2 + $0x20] sm:$0xff] %v313
    %415 = vst [vmem:[#allocation2 + $0x28] sm:$0xff] %v383
    %416 = vst [vmem:[#allocation2 + $0x30] sm:$0xff] %v317
    %417 = vst [vmem:[#allocation2 + $0x38] sm:$0xff] %v319
    %418 = vst [vmem:[#allocation2 + $0x40] sm:$0xff] %v388
    %419 = vst [vmem:[#allocation2 + $0x48] sm:$0xff] %v321
    %420 = vst [vmem:[#allocation2 + $0x50] sm:$0xff] %v323
    %421 = vst [vmem:[#allocation2 + $0x58] sm:$0xff] %v391
    %422 = vst [vmem:[#allocation2 + $0x60] sm:$0xff] %v327
    %423 = vst [vmem:[#allocation2 + $0x68] sm:$0xff] %v329
    %424 = vst [vmem:[#allocation2 + $0x70] sm:$0xff] %v396
    %425 = vst [vmem:[#allocation2 + $0x78] sm:$0xff] %v331
    %426 = vst [vmem:[#allocation2 + $0x80] sm:$0xff] %v333
    %427 = vst [vmem:[#allocation2 + $0x88] sm:$0xff] %v399
    %428 = vst [vmem:[#allocation2 + $0x90] sm:$0xff] %v337
    %429 = vst [vmem:[#allocation2 + $0x98] sm:$0xff] %v339
    %430 = vst [vmem:[#allocation2 + $0xa0] sm:$0xff] %v404
    %431 = vst [vmem:[#allocation2 + $0xa8] sm:$0xff] %v341
    %432 = vst [vmem:[#allocation2 + $0xb0] sm:$0xff] %v343
    %433 = vst [vmem:[#allocation2 + $0xb8] sm:$0xff] %v407
    %v434 = vld [vmem:[#allocation8] sm:$0xff]
    %v435 = vld [vmem:[#allocation8 + $0x8] sm:$0xf]
    %v436 = vld [vmem:[#allocation8 + $0xc] sm:$0xff]
    %v437 = vld [vmem:[#allocation8 + $0x14] sm:$0xf]
    %v438 = vld [vmem:[#allocation8 + $0x18] sm:$0xff]
    %v439 = vld [vmem:[#allocation8 + $0x20] sm:$0xf]
    %v440 = vld [vmem:[#allocation8 + $0x24] sm:$0xff]
    %v441 = vld [vmem:[#allocation8 + $0x2c] sm:$0xf]
    %v442 = vld [vmem:[#allocation8 + $0x30] sm:$0xff]
    %v443 = vld [vmem:[#allocation8 + $0x38] sm:$0xf]
    %v444 = vld [vmem:[#allocation8 + $0x3c] sm:$0xff]
    %v445 = vld [vmem:[#allocation8 + $0x44] sm:$0xf]
    %v446 = vld [vmem:[#allocation8 + $0x48] sm:$0xff]
    %v447 = vld [vmem:[#allocation8 + $0x50] sm:$0xf]
    %v448 = vld [vmem:[#allocation8 + $0x54] sm:$0xff]
    %v449 = vld [vmem:[#allocation8 + $0x5c] sm:$0xf]
    %v450 = vld [vmem:[#allocation8 + $0x60] sm:$0xff]
    %v451 = vld [vmem:[#allocation8 + $0x68] sm:$0xf]
    %v452 = vld [vmem:[#allocation8 + $0x6c] sm:$0xff]
    %v453 = vld [vmem:[#allocation8 + $0x74] sm:$0xf]
    %v454 = vld [vmem:[#allocation8 + $0x78] sm:$0xff]
    %v455 = vld [vmem:[#allocation8 + $0x80] sm:$0xf]
    %v456 = vld [vmem:[#allocation8 + $0x84] sm:$0xff]
    %v457 = vld [vmem:[#allocation8 + $0x8c] sm:$0xf]
    %v458 = vld [vmem:[#allocation8 + $0x90] sm:$0xff]
    %v459 = vld [vmem:[#allocation8 + $0x98] sm:$0xf]
    %v460 = vld [vmem:[#allocation8 + $0x9c] sm:$0xff]
    %v461 = vld [vmem:[#allocation8 + $0xa4] sm:$0xf]
    %v462 = vld [vmem:[#allocation8 + $0xa8] sm:$0xff]
    %v463 = vld [vmem:[#allocation8 + $0xb0] sm:$0xf]
    %v464 = vld [vmem:[#allocation8 + $0xb4] sm:$0xff]
    %v465 = vld [vmem:[#allocation8 + $0xbc] sm:$0xf]
    %v466 = vld [vmem:[%s4] sm:$0x1]
    %s467 = smul.u32 0, 3
    %s468 = smul.addr %s467, 8
    %s469 = scalar_lea.vmem [#allocation2], %s468
    %v470 = vld [vmem:[%s469] sm:$0xff]
    %v471 = vld [vmem:[%s469 + $0x8] sm:$0xff]
    %v472 = vld [vmem:[%s469 + $0x10] sm:$0xff]
    %v505 = vunpack.c.l.b16 %v434
    %v506 = vunpack.c.h.b16 %v434
    %v507 = vunpack.c.l.b16 %v435
    %v508 = vunpack.c.l.b16 %v436
    %v509 = vunpack.c.h.b16 %v436
    %v510 = vunpack.c.l.b16 %v437
    %v511 = vunpack.c.l.b16 %v438
    %v512 = vunpack.c.h.b16 %v438
    %v513 = vunpack.c.l.b16 %v439
    %v514 = vunpack.c.l.b16 %v440
    %v515 = vunpack.c.h.b16 %v440
    %v516 = vunpack.c.l.b16 %v441
    %v517 = vunpack.c.l.b16 %v442
    %v518 = vunpack.c.h.b16 %v442
    %v519 = vunpack.c.l.b16 %v443
    %v520 = vunpack.c.l.b16 %v444
    %v521 = vunpack.c.h.b16 %v444
    %v522 = vunpack.c.l.b16 %v445
    %v523 = vunpack.c.l.b16 %v446
    %v524 = vunpack.c.h.b16 %v446
    %v525 = vunpack.c.l.b16 %v447
    %v526 = vunpack.c.l.b16 %v448
    %v527 = vunpack.c.h.b16 %v448
    %v528 = vunpack.c.l.b16 %v449
    %v529 = vunpack.c.l.b16 %v450
    %v530 = vunpack.c.h.b16 %v450
    %v531 = vunpack.c.l.b16 %v451
    %v532 = vunpack.c.l.b16 %v452
    %v533 = vunpack.c.h.b16 %v452
    %v534 = vunpack.c.l.b16 %v453
    %v535 = vunpack.c.l.b16 %v454
    %v536 = vunpack.c.h.b16 %v454
    %v537 = vunpack.c.l.b16 %v455
    %v538 = vunpack.c.l.b16 %v456
    %v539 = vunpack.c.h.b16 %v456
    %v540 = vunpack.c.l.b16 %v457
    %v541 = vunpack.c.l.b16 %v458
    %v542 = vunpack.c.h.b16 %v458
    %v543 = vunpack.c.l.b16 %v459
    %v544 = vunpack.c.l.b16 %v460
    %v545 = vunpack.c.h.b16 %v460
    %v546 = vunpack.c.l.b16 %v461
    %v547 = vunpack.c.l.b16 %v462
    %v548 = vunpack.c.h.b16 %v462
    %v549 = vunpack.c.l.b16 %v463
    %v550 = vunpack.c.l.b16 %v464
    %v551 = vunpack.c.h.b16 %v464
    %v552 = vunpack.c.l.b16 %v465
    %v553 = vpack.c.b16 %v508, %v505
    %v554 = vpack.c.b16 %v509, %v506
    %v555 = vpack.c.b16 %v510, %v507
    %v556 = vpack.c.b16 %v514, %v511
    %v557 = vpack.c.b16 %v515, %v512
    %v558 = vpack.c.b16 %v516, %v513
    %v559 = vpack.c.b16 %v520, %v517
    %v560 = vpack.c.b16 %v521, %v518
    %v561 = vpack.c.b16 %v522, %v519
    %v562 = vpack.c.b16 %v526, %v523
    %v563 = vpack.c.b16 %v527, %v524
    %v564 = vpack.c.b16 %v528, %v525
    %v565 = vpack.c.b16 %v532, %v529
    %v566 = vpack.c.b16 %v533, %v530
    %v567 = vpack.c.b16 %v534, %v531
    %v568 = vpack.c.b16 %v538, %v535
    %v569 = vpack.c.b16 %v539, %v536
    %v570 = vpack.c.b16 %v540, %v537
    %v571 = vpack.c.b16 %v544, %v541
    %v572 = vpack.c.b16 %v545, %v542
    %v573 = vpack.c.b16 %v546, %v543
    %v574 = vpack.c.b16 %v550, %v547
    %v575 = vpack.c.b16 %v551, %v548
    %v576 = vpack.c.b16 %v552, %v549
    %601 = vmatprep.subr.bf16.mxu0 %v554
    %602 = vmatpush1.bf16.msra.mxu0 %v553
    %603 = vmatprep.subr.bf16.mxu0 %v557
    %604 = vmatpush1.bf16.msra.mxu0 %v556
    %605 = vmatprep.subr.bf16.mxu0 %v560
    %606 = vmatpush1.bf16.msra.mxu0 %v559
    %607 = vmatprep.subr.bf16.mxu0 %v563
    %608 = vmatpush1.bf16.msra.mxu0 %v562
    %609 = vmatprep.subr.bf16.mxu0 %v566
    %610 = vmatpush1.bf16.msra.mxu0 %v565
    %611 = vmatprep.subr.bf16.mxu0 %v569
    %612 = vmatpush1.bf16.msra.mxu0 %v568
    %613 = vmatprep.subr.bf16.mxu0 %v572
    %614 = vmatpush1.bf16.msra.mxu0 %v571
    %615 = vmatprep.subr.bf16.mxu0 %v575
    %616 = vmatpush1.bf16.msra.mxu0 %v574
    %617 = vmatprep.subr.bf16.mxu0 0
    %618 = vmatpush1.bf16.msra.mxu0 0
    %619 = vmatprep.subr.bf16.mxu0 0
    %620 = vmatpush1.bf16.msra.mxu0 0
    %621 = vmatprep.subr.bf16.mxu0 0
    %622 = vmatpush1.bf16.msra.mxu0 0
    %623 = vmatprep.subr.bf16.mxu0 0
    %624 = vmatpush1.bf16.msra.mxu0 0
    %625 = vmatprep.subr.bf16.mxu0 0
    %626 = vmatpush1.bf16.msra.mxu0 0
    %627 = vmatprep.subr.bf16.mxu0 0
    %628 = vmatpush1.bf16.msra.mxu0 0
    %629 = vmatprep.subr.bf16.mxu0 0
    %630 = vmatpush1.bf16.msra.mxu0 0
    %631 = vmatprep.subr.bf16.mxu0 0
    %632 = vmatpush1.bf16.msra.mxu0 0
    %633 = vmatprep.mubr.bf16.mxu0 0
    %634 = vmatmul.mubr.bf16.gmra.mrb[0].mxu0 0
    %v635 = vpop.f32.mrb[0].mxu0
    %v636 = vadd.f32 0.0, %v635
    %v637 = vpop.f32.mrb[0].mxu0
    %v638 = vadd.f32 0.0, %v637
    %v639 = vpop.f32.mrb[0].mxu0
    %v640 = vpop.f32.mrb[0].mxu0
    %641 = vdwg.mxu0
    %642 = vmatprep.subr.bf16.mxu0 0
    %643 = vmatpush1.bf16.msra.mxu0 %v555
    %644 = vmatprep.subr.bf16.mxu0 0
    %645 = vmatpush1.bf16.msra.mxu0 %v558
    %646 = vmatprep.subr.bf16.mxu0 0
    %647 = vmatpush1.bf16.msra.mxu0 %v561
    %648 = vmatprep.subr.bf16.mxu0 0
    %649 = vmatpush1.bf16.msra.mxu0 %v564
    %650 = vmatprep.subr.bf16.mxu0 0
    %651 = vmatpush1.bf16.msra.mxu0 %v567
    %652 = vmatprep.subr.bf16.mxu0 0
    %653 = vmatpush1.bf16.msra.mxu0 %v570
    %654 = vmatprep.subr.bf16.mxu0 0
    %655 = vmatpush1.bf16.msra.mxu0 %v573
    %656 = vmatprep.subr.bf16.mxu0 0
    %657 = vmatpush1.bf16.msra.mxu0 %v576
    %658 = vmatprep.subr.bf16.mxu0 0
    %659 = vmatpush1.bf16.msra.mxu0 0
    %660 = vmatprep.subr.bf16.mxu0 0
    %661 = vmatpush1.bf16.msra.mxu0 0
    %662 = vmatprep.subr.bf16.mxu0 0
    %663 = vmatpush1.bf16.msra.mxu0 0
    %664 = vmatprep.subr.bf16.mxu0 0
    %665 = vmatpush1.bf16.msra.mxu0 0
    %666 = vmatprep.subr.bf16.mxu0 0
    %667 = vmatpush1.bf16.msra.mxu0 0
    %668 = vmatprep.subr.bf16.mxu0 0
    %669 = vmatpush1.bf16.msra.mxu0 0
    %670 = vmatprep.subr.bf16.mxu0 0
    %671 = vmatpush1.bf16.msra.mxu0 0
    %672 = vmatprep.subr.bf16.mxu0 0
    %673 = vmatpush1.bf16.msra.mxu0 0
    %674 = vmatprep.mubr.bf16.mxu0 0
    %675 = vmatmul.mubr.bf16.gmra.mrb[0].mxu0 0
    %v676 = vpop.f32.mrb[0].mxu0
    %v677 = vadd.f32 0.0, %v676
    %v678 = vpop.f32.mrb[0].mxu0
    %v679 = vpop.f32.mrb[0].mxu0
    %v680 = vpop.f32.mrb[0].mxu0
    %681 = vdwg.mxu0
    %v682 = vadd.f32 %v470, %v636
    %v683 = vxor.u32 %v682, 2147483648
    %v684 = vmul.f32 %v683, 1.442695
    %v685 = vpow.pop %v684
    %v686 = vadd.f32 %v685, 1.0
    %v687 = vrcp.pop %v686
    %v688 = vmul.f32 1.0, %v687
    %v689 = vadd.f32 %v471, %v638
    %v690 = vxor.u32 %v689, 2147483648
    %v691 = vmul.f32 %v690, 1.442695
    %v692 = vpow.pop %v691
    %v693 = vadd.f32 %v692, 1.0
    %v694 = vrcp.pop %v693
    %v695 = vmul.f32 1.0, %v694
    %v697 = vlaneseq
    %v698 = vshrl.u32 %v697, 7
    %v699 = vsub.s32 0, %v698
    %v700 = vrot.slane %v466, %v699
    %v702 = vadd.f32 %v677, %v700
    %v703 = vmul.f32 %v688, %v702
    %v704 = vadd.f32 %v472, %v703
    %v705 = vtanh.pop %v704
    %v706 = vsub.f32 1.0, %v695
    %v707 = vmul.f32 %v706, %v705
    %v708 = vmul.f32 %v695, 0.0
    %v709 = vadd.f32 %v707, %v708
    %s710 = smul.u32 1, 3
    %s711 = smul.addr %s710, 8
    %s712 = scalar_lea.vmem [#allocation2], %s711
    %v713 = vld [vmem:[%s712] sm:$0xff]
    %v714 = vld [vmem:[%s712 + $0x8] sm:$0xff]
    %v715 = vld [vmem:[%s712 + $0x10] sm:$0xff]
    %v716 = vpack.c.bf16 %v709, %v709
    %717 = vmatprep.subr.bf16.mxu0 %v554
    %718 = vmatpush1.bf16.msra.mxu0 %v553
    %719 = vmatprep.subr.bf16.mxu0 %v557
    %720 = vmatpush1.bf16.msra.mxu0 %v556
    %721 = vmatprep.subr.bf16.mxu0 %v560
    %722 = vmatpush1.bf16.msra.mxu0 %v559
    %723 = vmatprep.subr.bf16.mxu0 %v563
    %724 = vmatpush1.bf16.msra.mxu0 %v562
    %725 = vmatprep.subr.bf16.mxu0 %v566
    %726 = vmatpush1.bf16.msra.mxu0 %v565
    %727 = vmatprep.subr.bf16.mxu0 %v569
    %728 = vmatpush1.bf16.msra.mxu0 %v568
    %729 = vmatprep.subr.bf16.mxu0 %v572
    %730 = vmatpush1.bf16.msra.mxu0 %v571
    %731 = vmatprep.subr.bf16.mxu0 %v575
    %732 = vmatpush1.bf16.msra.mxu0 %v574
    %733 = vmatprep.subr.bf16.mxu0 0
    %734 = vmatpush1.bf16.msra.mxu0 0
    %735 = vmatprep.subr.bf16.mxu0 0
    %736 = vmatpush1.bf16.msra.mxu0 0
    %737 = vmatprep.subr.bf16.mxu0 0
    %738 = vmatpush1.bf16.msra.mxu0 0
    %739 = vmatprep.subr.bf16.mxu0 0
    %740 = vmatpush1.bf16.msra.mxu0 0
    %741 = vmatprep.subr.bf16.mxu0 0
    %742 = vmatpush1.bf16.msra.mxu0 0
    %743 = vmatprep.subr.bf16.mxu0 0
    %744 = vmatpush1.bf16.msra.mxu0 0
    %745 = vmatprep.subr.bf16.mxu0 0
    %746 = vmatpush1.bf16.msra.mxu0 0
    %747 = vmatprep.subr.bf16.mxu0 0
    %748 = vmatpush1.bf16.msra.mxu0 0
    %749 = vmatprep.mubr.bf16.mxu0 0
    %750 = vmatmul.mubr.bf16.gmra.mrb[0].mxu0 %v716
    %v751 = vpop.f32.mrb[0].mxu0
    %v752 = vadd.f32 0.0, %v751
    %v753 = vpop.f32.mrb[0].mxu0
    %v754 = vadd.f32 0.0, %v753
    %v755 = vpop.f32.mrb[0].mxu0
    %v756 = vpop.f32.mrb[0].mxu0
    %757 = vdwg.mxu0
    %758 = vmatprep.subr.bf16.mxu0 0
    %759 = vmatpush1.bf16.msra.mxu0 %v555
    %760 = vmatprep.subr.bf16.mxu0 0
    %761 = vmatpush1.bf16.msra.mxu0 %v558
    %762 = vmatprep.subr.bf16.mxu0 0
    %763 = vmatpush1.bf16.msra.mxu0 %v561
    %764 = vmatprep.subr.bf16.mxu0 0
    %765 = vmatpush1.bf16.msra.mxu0 %v564
    %766 = vmatprep.subr.bf16.mxu0 0
    %767 = vmatpush1.bf16.msra.mxu0 %v567
    %768 = vmatprep.subr.bf16.mxu0 0
    %769 = vmatpush1.bf16.msra.mxu0 %v570
    %770 = vmatprep.subr.bf16.mxu0 0
    %771 = vmatpush1.bf16.msra.mxu0 %v573
    %772 = vmatprep.subr.bf16.mxu0 0
    %773 = vmatpush1.bf16.msra.mxu0 %v576
    %774 = vmatprep.subr.bf16.mxu0 0
    %775 = vmatpush1.bf16.msra.mxu0 0
    %776 = vmatprep.subr.bf16.mxu0 0
    %777 = vmatpush1.bf16.msra.mxu0 0
    %778 = vmatprep.subr.bf16.mxu0 0
    %779 = vmatpush1.bf16.msra.mxu0 0
    %780 = vmatprep.subr.bf16.mxu0 0
    %781 = vmatpush1.bf16.msra.mxu0 0
    %782 = vmatprep.subr.bf16.mxu0 0
    %783 = vmatpush1.bf16.msra.mxu0 0
    %784 = vmatprep.subr.bf16.mxu0 0
    %785 = vmatpush1.bf16.msra.mxu0 0
    %786 = vmatprep.subr.bf16.mxu0 0
    %787 = vmatpush1.bf16.msra.mxu0 0
    %788 = vmatprep.subr.bf16.mxu0 0
    %789 = vmatpush1.bf16.msra.mxu0 0
    %790 = vmatprep.mubr.bf16.mxu0 0
    %791 = vmatmul.mubr.bf16.gmra.mrb[0].mxu0 %v716
    %v792 = vpop.f32.mrb[0].mxu0
    %v793 = vadd.f32 0.0, %v792
    %v794 = vpop.f32.mrb[0].mxu0
    %v795 = vpop.f32.mrb[0].mxu0
    %v796 = vpop.f32.mrb[0].mxu0
    %797 = vdwg.mxu0
    %v798 = vadd.f32 %v713, %v752
    %v799 = vxor.u32 %v798, 2147483648
    %v800 = vmul.f32 %v799, 1.442695
    %v801 = vpow.pop %v800
    %v802 = vadd.f32 %v801, 1.0
    %v803 = vrcp.pop %v802
    %v804 = vmul.f32 1.0, %v803
    %v805 = vadd.f32 %v714, %v754
    %v806 = vxor.u32 %v805, 2147483648
    %v807 = vmul.f32 %v806, 1.442695
    %v808 = vpow.pop %v807
    %v809 = vadd.f32 %v808, 1.0
    %v810 = vrcp.pop %v809
    %v811 = vmul.f32 1.0, %v810
    %v812 = vadd.f32 %v793, %v700
    %v813 = vmul.f32 %v804, %v812
    %v814 = vadd.f32 %v715, %v813
    %v815 = vtanh.pop %v814
    %v816 = vsub.f32 1.0, %v811
    %v817 = vmul.f32 %v816, %v815
    %v818 = vmul.f32 %v811, %v709
    %v819 = vadd.f32 %v817, %v818
    %s820 = smul.u32 2, 3
    %s821 = smul.addr %s820, 8
    %s822 = scalar_lea.vmem [#allocation2], %s821
    %v823 = vld [vmem:[%s822] sm:$0xff]
    %v824 = vld [vmem:[%s822 + $0x8] sm:$0xff]
    %v825 = vld [vmem:[%s822 + $0x10] sm:$0xff]
    %v826 = vpack.c.bf16 %v819, %v819
    %827 = vmatprep.subr.bf16.mxu0 %v554
    %828 = vmatpush1.bf16.msra.mxu0 %v553
    %829 = vmatprep.subr.bf16.mxu0 %v557
    %830 = vmatpush1.bf16.msra.mxu0 %v556
    %831 = vmatprep.subr.bf16.mxu0 %v560
    %832 = vmatpush1.bf16.msra.mxu0 %v559
    %833 = vmatprep.subr.bf16.mxu0 %v563
    %834 = vmatpush1.bf16.msra.mxu0 %v562
    %835 = vmatprep.subr.bf16.mxu0 %v566
    %836 = vmatpush1.bf16.msra.mxu0 %v565
    %837 = vmatprep.subr.bf16.mxu0 %v569
    %838 = vmatpush1.bf16.msra.mxu0 %v568
    %839 = vmatprep.subr.bf16.mxu0 %v572
    %840 = vmatpush1.bf16.msra.mxu0 %v571
    %841 = vmatprep.subr.bf16.mxu0 %v575
    %842 = vmatpush1.bf16.msra.mxu0 %v574
    %843 = vmatprep.subr.bf16.mxu0 0
    %844 = vmatpush1.bf16.msra.mxu0 0
    %845 = vmatprep.subr.bf16.mxu0 0
    %846 = vmatpush1.bf16.msra.mxu0 0
    %847 = vmatprep.subr.bf16.mxu0 0
    %848 = vmatpush1.bf16.msra.mxu0 0
    %849 = vmatprep.subr.bf16.mxu0 0
    %850 = vmatpush1.bf16.msra.mxu0 0
    %851 = vmatprep.subr.bf16.mxu0 0
    %852 = vmatpush1.bf16.msra.mxu0 0
    %853 = vmatprep.subr.bf16.mxu0 0
    %854 = vmatpush1.bf16.msra.mxu0 0
    %855 = vmatprep.subr.bf16.mxu0 0
    %856 = vmatpush1.bf16.msra.mxu0 0
    %857 = vmatprep.subr.bf16.mxu0 0
    %858 = vmatpush1.bf16.msra.mxu0 0
    %859 = vmatprep.mubr.bf16.mxu0 0
    %860 = vmatmul.mubr.bf16.gmra.mrb[0].mxu0 %v826
    %v861 = vpop.f32.mrb[0].mxu0
    %v862 = vadd.f32 0.0, %v861
    %v863 = vpop.f32.mrb[0].mxu0
    %v864 = vadd.f32 0.0, %v863
    %v865 = vpop.f32.mrb[0].mxu0
    %v866 = vpop.f32.mrb[0].mxu0
    %867 = vdwg.mxu0
    %868 = vmatprep.subr.bf16.mxu0 0
    %869 = vmatpush1.bf16.msra.mxu0 %v555
    %870 = vmatprep.subr.bf16.mxu0 0
    %871 = vmatpush1.bf16.msra.mxu0 %v558
    %872 = vmatprep.subr.bf16.mxu0 0
    %873 = vmatpush1.bf16.msra.mxu0 %v561
    %874 = vmatprep.subr.bf16.mxu0 0
    %875 = vmatpush1.bf16.msra.mxu0 %v564
    %876 = vmatprep.subr.bf16.mxu0 0
    %877 = vmatpush1.bf16.msra.mxu0 %v567
    %878 = vmatprep.subr.bf16.mxu0 0
    %879 = vmatpush1.bf16.msra.mxu0 %v570
    %880 = vmatprep.subr.bf16.mxu0 0
    %881 = vmatpush1.bf16.msra.mxu0 %v573
    %882 = vmatprep.subr.bf16.mxu0 0
    %883 = vmatpush1.bf16.msra.mxu0 %v576
    %884 = vmatprep.subr.bf16.mxu0 0
    %885 = vmatpush1.bf16.msra.mxu0 0
    %886 = vmatprep.subr.bf16.mxu0 0
    %887 = vmatpush1.bf16.msra.mxu0 0
    %888 = vmatprep.subr.bf16.mxu0 0
    %889 = vmatpush1.bf16.msra.mxu0 0
    %890 = vmatprep.subr.bf16.mxu0 0
    %891 = vmatpush1.bf16.msra.mxu0 0
    %892 = vmatprep.subr.bf16.mxu0 0
    %893 = vmatpush1.bf16.msra.mxu0 0
    %894 = vmatprep.subr.bf16.mxu0 0
    %895 = vmatpush1.bf16.msra.mxu0 0
    %896 = vmatprep.subr.bf16.mxu0 0
    %897 = vmatpush1.bf16.msra.mxu0 0
    %898 = vmatprep.subr.bf16.mxu0 0
    %899 = vmatpush1.bf16.msra.mxu0 0
    %900 = vmatprep.mubr.bf16.mxu0 0
    %901 = vmatmul.mubr.bf16.gmra.mrb[0].mxu0 %v826
    %v902 = vpop.f32.mrb[0].mxu0
    %v903 = vadd.f32 0.0, %v902
    %v904 = vpop.f32.mrb[0].mxu0
    %v905 = vpop.f32.mrb[0].mxu0
    %v906 = vpop.f32.mrb[0].mxu0
    %907 = vdwg.mxu0
    %v908 = vadd.f32 %v823, %v862
    %v909 = vxor.u32 %v908, 2147483648
    %v910 = vmul.f32 %v909, 1.442695
    %v911 = vpow.pop %v910
    %v912 = vadd.f32 %v911, 1.0
    %v913 = vrcp.pop %v912
    %v914 = vmul.f32 1.0, %v913
    %v915 = vadd.f32 %v824, %v864
    %v916 = vxor.u32 %v915, 2147483648
    %v917 = vmul.f32 %v916, 1.442695
    %v918 = vpow.pop %v917
    %v919 = vadd.f32 %v918, 1.0
    %v920 = vrcp.pop %v919
    %v921 = vmul.f32 1.0, %v920
    %v922 = vadd.f32 %v903, %v700
    %v923 = vmul.f32 %v914, %v922
    %v924 = vadd.f32 %v825, %v923
    %v925 = vtanh.pop %v924
    %v926 = vsub.f32 1.0, %v921
    %v927 = vmul.f32 %v926, %v925
    %v928 = vmul.f32 %v921, %v819
    %v929 = vadd.f32 %v927, %v928
    %s930 = smul.u32 3, 3
    %s931 = smul.addr %s930, 8
    %s932 = scalar_lea.vmem [#allocation2], %s931
    %v933 = vld [vmem:[%s932] sm:$0xff]
    %v934 = vld [vmem:[%s932 + $0x8] sm:$0xff]
    %v935 = vld [vmem:[%s932 + $0x10] sm:$0xff]
    %v936 = vpack.c.bf16 %v929, %v929
    %937 = vmatprep.subr.bf16.mxu0 %v554
    %938 = vmatpush1.bf16.msra.mxu0 %v553
    %939 = vmatprep.subr.bf16.mxu0 %v557
    %940 = vmatpush1.bf16.msra.mxu0 %v556
    %941 = vmatprep.subr.bf16.mxu0 %v560
    %942 = vmatpush1.bf16.msra.mxu0 %v559
    %943 = vmatprep.subr.bf16.mxu0 %v563
    %944 = vmatpush1.bf16.msra.mxu0 %v562
    %945 = vmatprep.subr.bf16.mxu0 %v566
    %946 = vmatpush1.bf16.msra.mxu0 %v565
    %947 = vmatprep.subr.bf16.mxu0 %v569
    %948 = vmatpush1.bf16.msra.mxu0 %v568
    %949 = vmatprep.subr.bf16.mxu0 %v572
    %950 = vmatpush1.bf16.msra.mxu0 %v571
    %951 = vmatprep.subr.bf16.mxu0 %v575
    %952 = vmatpush1.bf16.msra.mxu0 %v574
    %953 = vmatprep.subr.bf16.mxu0 0
    %954 = vmatpush1.bf16.msra.mxu0 0
    %955 = vmatprep.subr.bf16.mxu0 0
    %956 = vmatpush1.bf16.msra.mxu0 0
    %957 = vmatprep.subr.bf16.mxu0 0
    %958 = vmatpush1.bf16.msra.mxu0 0
    %959 = vmatprep.subr.bf16.mxu0 0
    %960 = vmatpush1.bf16.msra.mxu0 0
    %961 = vmatprep.subr.bf16.mxu0 0
    %962 = vmatpush1.bf16.msra.mxu0 0
    %963 = vmatprep.subr.bf16.mxu0 0
    %964 = vmatpush1.bf16.msra.mxu0 0
    %965 = vmatprep.subr.bf16.mxu0 0
    %966 = vmatpush1.bf16.msra.mxu0 0
    %967 = vmatprep.subr.bf16.mxu0 0
    %968 = vmatpush1.bf16.msra.mxu0 0
    %969 = vmatprep.mubr.bf16.mxu0 0
    %970 = vmatmul.mubr.bf16.gmra.mrb[0].mxu0 %v936
    %v971 = vpop.f32.mrb[0].mxu0
    %v972 = vadd.f32 0.0, %v971
    %v973 = vpop.f32.mrb[0].mxu0
    %v974 = vadd.f32 0.0, %v973
    %v975 = vpop.f32.mrb[0].mxu0
    %v976 = vpop.f32.mrb[0].mxu0
    %977 = vdwg.mxu0
    %978 = vmatprep.subr.bf16.mxu0 0
    %979 = vmatpush1.bf16.msra.mxu0 %v555
    %980 = vmatprep.subr.bf16.mxu0 0
    %981 = vmatpush1.bf16.msra.mxu0 %v558
    %982 = vmatprep.subr.bf16.mxu0 0
    %983 = vmatpush1.bf16.msra.mxu0 %v561
    %984 = vmatprep.subr.bf16.mxu0 0
    %985 = vmatpush1.bf16.msra.mxu0 %v564
    %986 = vmatprep.subr.bf16.mxu0 0
    %987 = vmatpush1.bf16.msra.mxu0 %v567
    %988 = vmatprep.subr.bf16.mxu0 0
    %989 = vmatpush1.bf16.msra.mxu0 %v570
    %990 = vmatprep.subr.bf16.mxu0 0
    %991 = vmatpush1.bf16.msra.mxu0 %v573
    %992 = vmatprep.subr.bf16.mxu0 0
    %993 = vmatpush1.bf16.msra.mxu0 %v576
    %994 = vmatprep.subr.bf16.mxu0 0
    %995 = vmatpush1.bf16.msra.mxu0 0
    %996 = vmatprep.subr.bf16.mxu0 0
    %997 = vmatpush1.bf16.msra.mxu0 0
    %998 = vmatprep.subr.bf16.mxu0 0
    %999 = vmatpush1.bf16.msra.mxu0 0
    %1000 = vmatprep.subr.bf16.mxu0 0
    %1001 = vmatpush1.bf16.msra.mxu0 0
    %1002 = vmatprep.subr.bf16.mxu0 0
    %1003 = vmatpush1.bf16.msra.mxu0 0
    %1004 = vmatprep.subr.bf16.mxu0 0
    %1005 = vmatpush1.bf16.msra.mxu0 0
    %1006 = vmatprep.subr.bf16.mxu0 0
    %1007 = vmatpush1.bf16.msra.mxu0 0
    %1008 = vmatprep.subr.bf16.mxu0 0
    %1009 = vmatpush1.bf16.msra.mxu0 0
    %1010 = vmatprep.mubr.bf16.mxu0 0
    %1011 = vmatmul.mubr.bf16.gmra.mrb[0].mxu0 %v936
    %v1012 = vpop.f32.mrb[0].mxu0
    %v1013 = vadd.f32 0.0, %v1012
    %v1014 = vpop.f32.mrb[0].mxu0
    %v1015 = vpop.f32.mrb[0].mxu0
    %v1016 = vpop.f32.mrb[0].mxu0
    %1017 = vdwg.mxu0
    %v1018 = vadd.f32 %v933, %v972
    %v1019 = vxor.u32 %v1018, 2147483648
    %v1020 = vmul.f32 %v1019, 1.442695
    %v1021 = vpow.pop %v1020
    %v1022 = vadd.f32 %v1021, 1.0
    %v1023 = vrcp.pop %v1022
    %v1024 = vmul.f32 1.0, %v1023
    %v1025 = vadd.f32 %v934, %v974
    %v1026 = vxor.u32 %v1025, 2147483648
    %v1027 = vmul.f32 %v1026, 1.442695
    %v1028 = vpow.pop %v1027
    %v1029 = vadd.f32 %v1028, 1.0
    %v1030 = vrcp.pop %v1029
    %v1031 = vmul.f32 1.0, %v1030
    %v1032 = vadd.f32 %v1013, %v700
    %v1033 = vmul.f32 %v1024, %v1032
    %v1034 = vadd.f32 %v935, %v1033
    %v1035 = vtanh.pop %v1034
    %v1036 = vsub.f32 1.0, %v1031
    %v1037 = vmul.f32 %v1036, %v1035
    %v1038 = vmul.f32 %v1031, %v929
    %v1039 = vadd.f32 %v1037, %v1038
    %s1040 = smul.u32 4, 3
    %s1041 = smul.addr %s1040, 8
    %s1042 = scalar_lea.vmem [#allocation2], %s1041
    %v1043 = vld [vmem:[%s1042] sm:$0xff]
    %v1044 = vld [vmem:[%s1042 + $0x8] sm:$0xff]
    %v1045 = vld [vmem:[%s1042 + $0x10] sm:$0xff]
    %v1046 = vpack.c.bf16 %v1039, %v1039
    %1047 = vmatprep.subr.bf16.mxu0 %v554
    %1048 = vmatpush1.bf16.msra.mxu0 %v553
    %1049 = vmatprep.subr.bf16.mxu0 %v557
    %1050 = vmatpush1.bf16.msra.mxu0 %v556
    %1051 = vmatprep.subr.bf16.mxu0 %v560
    %1052 = vmatpush1.bf16.msra.mxu0 %v559
    %1053 = vmatprep.subr.bf16.mxu0 %v563
    %1054 = vmatpush1.bf16.msra.mxu0 %v562
    %1055 = vmatprep.subr.bf16.mxu0 %v566
    %1056 = vmatpush1.bf16.msra.mxu0 %v565
    %1057 = vmatprep.subr.bf16.mxu0 %v569
    %1058 = vmatpush1.bf16.msra.mxu0 %v568
    %1059 = vmatprep.subr.bf16.mxu0 %v572
    %1060 = vmatpush1.bf16.msra.mxu0 %v571
    %1061 = vmatprep.subr.bf16.mxu0 %v575
    %1062 = vmatpush1.bf16.msra.mxu0 %v574
    %1063 = vmatprep.subr.bf16.mxu0 0
    %1064 = vmatpush1.bf16.msra.mxu0 0
    %1065 = vmatprep.subr.bf16.mxu0 0
    %1066 = vmatpush1.bf16.msra.mxu0 0
    %1067 = vmatprep.subr.bf16.mxu0 0
    %1068 = vmatpush1.bf16.msra.mxu0 0
    %1069 = vmatprep.subr.bf16.mxu0 0
    %1070 = vmatpush1.bf16.msra.mxu0 0
    %1071 = vmatprep.subr.bf16.mxu0 0
    %1072 = vmatpush1.bf16.msra.mxu0 0
    %1073 = vmatprep.subr.bf16.mxu0 0
    %1074 = vmatpush1.bf16.msra.mxu0 0
    %1075 = vmatprep.subr.bf16.mxu0 0
    %1076 = vmatpush1.bf16.msra.mxu0 0
    %1077 = vmatprep.subr.bf16.mxu0 0
    %1078 = vmatpush1.bf16.msra.mxu0 0
    %1079 = vmatprep.mubr.bf16.mxu0 0
    %1080 = vmatmul.mubr.bf16.gmra.mrb[0].mxu0 %v1046
    %v1081 = vpop.f32.mrb[0].mxu0
    %v1082 = vadd.f32 0.0, %v1081
    %v1083 = vpop.f32.mrb[0].mxu0
    %v1084 = vadd.f32 0.0, %v1083
    %v1085 = vpop.f32.mrb[0].mxu0
    %v1086 = vpop.f32.mrb[0].mxu0
    %1087 = vdwg.mxu0
    %1088 = vmatprep.subr.bf16.mxu0 0
    %1089 = vmatpush1.bf16.msra.mxu0 %v555
    %1090 = vmatprep.subr.bf16.mxu0 0
    %1091 = vmatpush1.bf16.msra.mxu0 %v558
    %1092 = vmatprep.subr.bf16.mxu0 0
    %1093 = vmatpush1.bf16.msra.mxu0 %v561
    %1094 = vmatprep.subr.bf16.mxu0 0
    %1095 = vmatpush1.bf16.msra.mxu0 %v564
    %1096 = vmatprep.subr.bf16.mxu0 0
    %1097 = vmatpush1.bf16.msra.mxu0 %v567
    %1098 = vmatprep.subr.bf16.mxu0 0
    %1099 = vmatpush1.bf16.msra.mxu0 %v570
    %1100 = vmatprep.subr.bf16.mxu0 0
    %1101 = vmatpush1.bf16.msra.mxu0 %v573
    %1102 = vmatprep.subr.bf16.mxu0 0
    %1103 = vmatpush1.bf16.msra.mxu0 %v576
    %1104 = vmatprep.subr.bf16.mxu0 0
    %1105 = vmatpush1.bf16.msra.mxu0 0
    %1106 = vmatprep.subr.bf16.mxu0 0
    %1107 = vmatpush1.bf16.msra.mxu0 0
    %1108 = vmatprep.subr.bf16.mxu0 0
    %1109 = vmatpush1.bf16.msra.mxu0 0
    %1110 = vmatprep.subr.bf16.mxu0 0
    %1111 = vmatpush1.bf16.msra.mxu0 0
    %1112 = vmatprep.subr.bf16.mxu0 0
    %1113 = vmatpush1.bf16.msra.mxu0 0
    %1114 = vmatprep.subr.bf16.mxu0 0
    %1115 = vmatpush1.bf16.msra.mxu0 0
    %1116 = vmatprep.subr.bf16.mxu0 0
    %1117 = vmatpush1.bf16.msra.mxu0 0
    %1118 = vmatprep.subr.bf16.mxu0 0
    %1119 = vmatpush1.bf16.msra.mxu0 0
    %1120 = vmatprep.mubr.bf16.mxu0 0
    %1121 = vmatmul.mubr.bf16.gmra.mrb[0].mxu0 %v1046
    %v1122 = vpop.f32.mrb[0].mxu0
    %v1123 = vadd.f32 0.0, %v1122
    %v1124 = vpop.f32.mrb[0].mxu0
    %v1125 = vpop.f32.mrb[0].mxu0
    %v1126 = vpop.f32.mrb[0].mxu0
    %1127 = vdwg.mxu0
    %v1128 = vadd.f32 %v1043, %v1082
    %v1129 = vxor.u32 %v1128, 2147483648
    %v1130 = vmul.f32 %v1129, 1.442695
    %v1131 = vpow.pop %v1130
    %v1132 = vadd.f32 %v1131, 1.0
    %v1133 = vrcp.pop %v1132
    %v1134 = vmul.f32 1.0, %v1133
    %v1135 = vadd.f32 %v1044, %v1084
    %v1136 = vxor.u32 %v1135, 2147483648
    %v1137 = vmul.f32 %v1136, 1.442695
    %v1138 = vpow.pop %v1137
    %v1139 = vadd.f32 %v1138, 1.0
    %v1140 = vrcp.pop %v1139
    %v1141 = vmul.f32 1.0, %v1140
    %v1142 = vadd.f32 %v1123, %v700
    %v1143 = vmul.f32 %v1134, %v1142
    %v1144 = vadd.f32 %v1045, %v1143
    %v1145 = vtanh.pop %v1144
    %v1146 = vsub.f32 1.0, %v1141
    %v1147 = vmul.f32 %v1146, %v1145
    %v1148 = vmul.f32 %v1141, %v1039
    %v1149 = vadd.f32 %v1147, %v1148
    %s1150 = smul.u32 5, 3
    %s1151 = smul.addr %s1150, 8
    %s1152 = scalar_lea.vmem [#allocation2], %s1151
    %v1153 = vld [vmem:[%s1152] sm:$0xff]
    %v1154 = vld [vmem:[%s1152 + $0x8] sm:$0xff]
    %v1155 = vld [vmem:[%s1152 + $0x10] sm:$0xff]
    %v1156 = vpack.c.bf16 %v1149, %v1149
    %1157 = vmatprep.subr.bf16.mxu0 %v554
    %1158 = vmatpush1.bf16.msra.mxu0 %v553
    %1159 = vmatprep.subr.bf16.mxu0 %v557
    %1160 = vmatpush1.bf16.msra.mxu0 %v556
    %1161 = vmatprep.subr.bf16.mxu0 %v560
    %1162 = vmatpush1.bf16.msra.mxu0 %v559
    %1163 = vmatprep.subr.bf16.mxu0 %v563
    %1164 = vmatpush1.bf16.msra.mxu0 %v562
    %1165 = vmatprep.subr.bf16.mxu0 %v566
    %1166 = vmatpush1.bf16.msra.mxu0 %v565
    %1167 = vmatprep.subr.bf16.mxu0 %v569
    %1168 = vmatpush1.bf16.msra.mxu0 %v568
    %1169 = vmatprep.subr.bf16.mxu0 %v572
    %1170 = vmatpush1.bf16.msra.mxu0 %v571
    %1171 = vmatprep.subr.bf16.mxu0 %v575
    %1172 = vmatpush1.bf16.msra.mxu0 %v574
    %1173 = vmatprep.subr.bf16.mxu0 0
    %1174 = vmatpush1.bf16.msra.mxu0 0
    %1175 = vmatprep.subr.bf16.mxu0 0
    %1176 = vmatpush1.bf16.msra.mxu0 0
    %1177 = vmatprep.subr.bf16.mxu0 0
    %1178 = vmatpush1.bf16.msra.mxu0 0
    %1179 = vmatprep.subr.bf16.mxu0 0
    %1180 = vmatpush1.bf16.msra.mxu0 0
    %1181 = vmatprep.subr.bf16.mxu0 0
    %1182 = vmatpush1.bf16.msra.mxu0 0
    %1183 = vmatprep.subr.bf16.mxu0 0
    %1184 = vmatpush1.bf16.msra.mxu0 0
    %1185 = vmatprep.subr.bf16.mxu0 0
    %1186 = vmatpush1.bf16.msra.mxu0 0
    %1187 = vmatprep.subr.bf16.mxu0 0
    %1188 = vmatpush1.bf16.msra.mxu0 0
    %1189 = vmatprep.mubr.bf16.mxu0 0
    %1190 = vmatmul.mubr.bf16.gmra.mrb[0].mxu0 %v1156
    %v1191 = vpop.f32.mrb[0].mxu0
    %v1192 = vadd.f32 0.0, %v1191
    %v1193 = vpop.f32.mrb[0].mxu0
    %v1194 = vadd.f32 0.0, %v1193
    %v1195 = vpop.f32.mrb[0].mxu0
    %v1196 = vpop.f32.mrb[0].mxu0
    %1197 = vdwg.mxu0
    %1198 = vmatprep.subr.bf16.mxu0 0
    %1199 = vmatpush1.bf16.msra.mxu0 %v555
    %1200 = vmatprep.subr.bf16.mxu0 0
    %1201 = vmatpush1.bf16.msra.mxu0 %v558
    %1202 = vmatprep.subr.bf16.mxu0 0
    %1203 = vmatpush1.bf16.msra.mxu0 %v561
    %1204 = vmatprep.subr.bf16.mxu0 0
    %1205 = vmatpush1.bf16.msra.mxu0 %v564
    %1206 = vmatprep.subr.bf16.mxu0 0
    %1207 = vmatpush1.bf16.msra.mxu0 %v567
    %1208 = vmatprep.subr.bf16.mxu0 0
    %1209 = vmatpush1.bf16.msra.mxu0 %v570
    %1210 = vmatprep.subr.bf16.mxu0 0
    %1211 = vmatpush1.bf16.msra.mxu0 %v573
    %1212 = vmatprep.subr.bf16.mxu0 0
    %1213 = vmatpush1.bf16.msra.mxu0 %v576
    %1214 = vmatprep.subr.bf16.mxu0 0
    %1215 = vmatpush1.bf16.msra.mxu0 0
    %1216 = vmatprep.subr.bf16.mxu0 0
    %1217 = vmatpush1.bf16.msra.mxu0 0
    %1218 = vmatprep.subr.bf16.mxu0 0
    %1219 = vmatpush1.bf16.msra.mxu0 0
    %1220 = vmatprep.subr.bf16.mxu0 0
    %1221 = vmatpush1.bf16.msra.mxu0 0
    %1222 = vmatprep.subr.bf16.mxu0 0
    %1223 = vmatpush1.bf16.msra.mxu0 0
    %1224 = vmatprep.subr.bf16.mxu0 0
    %1225 = vmatpush1.bf16.msra.mxu0 0
    %1226 = vmatprep.subr.bf16.mxu0 0
    %1227 = vmatpush1.bf16.msra.mxu0 0
    %1228 = vmatprep.subr.bf16.mxu0 0
    %1229 = vmatpush1.bf16.msra.mxu0 0
    %1230 = vmatprep.mubr.bf16.mxu0 0
    %1231 = vmatmul.mubr.bf16.gmra.mrb[0].mxu0 %v1156
    %v1232 = vpop.f32.mrb[0].mxu0
    %v1233 = vadd.f32 0.0, %v1232
    %v1234 = vpop.f32.mrb[0].mxu0
    %v1235 = vpop.f32.mrb[0].mxu0
    %v1236 = vpop.f32.mrb[0].mxu0
    %1237 = vdwg.mxu0
    %v1238 = vadd.f32 %v1153, %v1192
    %v1239 = vxor.u32 %v1238, 2147483648
    %v1240 = vmul.f32 %v1239, 1.442695
    %v1241 = vpow.pop %v1240
    %v1242 = vadd.f32 %v1241, 1.0
    %v1243 = vrcp.pop %v1242
    %v1244 = vmul.f32 1.0, %v1243
    %v1245 = vadd.f32 %v1154, %v1194
    %v1246 = vxor.u32 %v1245, 2147483648
    %v1247 = vmul.f32 %v1246, 1.442695
    %v1248 = vpow.pop %v1247
    %v1249 = vadd.f32 %v1248, 1.0
    %v1250 = vrcp.pop %v1249
    %v1251 = vmul.f32 1.0, %v1250
    %v1252 = vadd.f32 %v1233, %v700
    %v1253 = vmul.f32 %v1244, %v1252
    %v1254 = vadd.f32 %v1155, %v1253
    %v1255 = vtanh.pop %v1254
    %v1256 = vsub.f32 1.0, %v1251
    %v1257 = vmul.f32 %v1256, %v1255
    %v1258 = vmul.f32 %v1251, %v1149
    %v1259 = vadd.f32 %v1257, %v1258
    %s1260 = smul.u32 6, 3
    %s1261 = smul.addr %s1260, 8
    %s1262 = scalar_lea.vmem [#allocation2], %s1261
    %v1263 = vld [vmem:[%s1262] sm:$0xff]
    %v1264 = vld [vmem:[%s1262 + $0x8] sm:$0xff]
    %v1265 = vld [vmem:[%s1262 + $0x10] sm:$0xff]
    %v1266 = vpack.c.bf16 %v1259, %v1259
    %1267 = vmatprep.subr.bf16.mxu0 %v554
    %1268 = vmatpush1.bf16.msra.mxu0 %v553
    %1269 = vmatprep.subr.bf16.mxu0 %v557
    %1270 = vmatpush1.bf16.msra.mxu0 %v556
    %1271 = vmatprep.subr.bf16.mxu0 %v560
    %1272 = vmatpush1.bf16.msra.mxu0 %v559
    %1273 = vmatprep.subr.bf16.mxu0 %v563
    %1274 = vmatpush1.bf16.msra.mxu0 %v562
    %1275 = vmatprep.subr.bf16.mxu0 %v566
    %1276 = vmatpush1.bf16.msra.mxu0 %v565
    %1277 = vmatprep.subr.bf16.mxu0 %v569
    %1278 = vmatpush1.bf16.msra.mxu0 %v568
    %1279 = vmatprep.subr.bf16.mxu0 %v572
    %1280 = vmatpush1.bf16.msra.mxu0 %v571
    %1281 = vmatprep.subr.bf16.mxu0 %v575
    %1282 = vmatpush1.bf16.msra.mxu0 %v574
    %1283 = vmatprep.subr.bf16.mxu0 0
    %1284 = vmatpush1.bf16.msra.mxu0 0
    %1285 = vmatprep.subr.bf16.mxu0 0
    %1286 = vmatpush1.bf16.msra.mxu0 0
    %1287 = vmatprep.subr.bf16.mxu0 0
    %1288 = vmatpush1.bf16.msra.mxu0 0
    %1289 = vmatprep.subr.bf16.mxu0 0
    %1290 = vmatpush1.bf16.msra.mxu0 0
    %1291 = vmatprep.subr.bf16.mxu0 0
    %1292 = vmatpush1.bf16.msra.mxu0 0
    %1293 = vmatprep.subr.bf16.mxu0 0
    %1294 = vmatpush1.bf16.msra.mxu0 0
    %1295 = vmatprep.subr.bf16.mxu0 0
    %1296 = vmatpush1.bf16.msra.mxu0 0
    %1297 = vmatprep.subr.bf16.mxu0 0
    %1298 = vmatpush1.bf16.msra.mxu0 0
    %1299 = vmatprep.mubr.bf16.mxu0 0
    %1300 = vmatmul.mubr.bf16.gmra.mrb[0].mxu0 %v1266
    %v1301 = vpop.f32.mrb[0].mxu0
    %v1302 = vadd.f32 0.0, %v1301
    %v1303 = vpop.f32.mrb[0].mxu0
    %v1304 = vadd.f32 0.0, %v1303
    %v1305 = vpop.f32.mrb[0].mxu0
    %v1306 = vpop.f32.mrb[0].mxu0
    %1307 = vdwg.mxu0
    %1308 = vmatprep.subr.bf16.mxu0 0
    %1309 = vmatpush1.bf16.msra.mxu0 %v555
    %1310 = vmatprep.subr.bf16.mxu0 0
    %1311 = vmatpush1.bf16.msra.mxu0 %v558
    %1312 = vmatprep.subr.bf16.mxu0 0
    %1313 = vmatpush1.bf16.msra.mxu0 %v561
    %1314 = vmatprep.subr.bf16.mxu0 0
    %1315 = vmatpush1.bf16.msra.mxu0 %v564
    %1316 = vmatprep.subr.bf16.mxu0 0
    %1317 = vmatpush1.bf16.msra.mxu0 %v567
    %1318 = vmatprep.subr.bf16.mxu0 0
    %1319 = vmatpush1.bf16.msra.mxu0 %v570
    %1320 = vmatprep.subr.bf16.mxu0 0
    %1321 = vmatpush1.bf16.msra.mxu0 %v573
    %1322 = vmatprep.subr.bf16.mxu0 0
    %1323 = vmatpush1.bf16.msra.mxu0 %v576
    %1324 = vmatprep.subr.bf16.mxu0 0
    %1325 = vmatpush1.bf16.msra.mxu0 0
    %1326 = vmatprep.subr.bf16.mxu0 0
    %1327 = vmatpush1.bf16.msra.mxu0 0
    %1328 = vmatprep.subr.bf16.mxu0 0
    %1329 = vmatpush1.bf16.msra.mxu0 0
    %1330 = vmatprep.subr.bf16.mxu0 0
    %1331 = vmatpush1.bf16.msra.mxu0 0
    %1332 = vmatprep.subr.bf16.mxu0 0
    %1333 = vmatpush1.bf16.msra.mxu0 0
    %1334 = vmatprep.subr.bf16.mxu0 0
    %1335 = vmatpush1.bf16.msra.mxu0 0
    %1336 = vmatprep.subr.bf16.mxu0 0
    %1337 = vmatpush1.bf16.msra.mxu0 0
    %1338 = vmatprep.subr.bf16.mxu0 0
    %1339 = vmatpush1.bf16.msra.mxu0 0
    %1340 = vmatprep.mubr.bf16.mxu0 0
    %1341 = vmatmul.mubr.bf16.gmra.mrb[0].mxu0 %v1266
    %v1342 = vpop.f32.mrb[0].mxu0
    %v1343 = vadd.f32 0.0, %v1342
    %v1344 = vpop.f32.mrb[0].mxu0
    %v1345 = vpop.f32.mrb[0].mxu0
    %v1346 = vpop.f32.mrb[0].mxu0
    %1347 = vdwg.mxu0
    %v1348 = vadd.f32 %v1263, %v1302
    %v1349 = vxor.u32 %v1348, 2147483648
    %v1350 = vmul.f32 %v1349, 1.442695
    %v1351 = vpow.pop %v1350
    %v1352 = vadd.f32 %v1351, 1.0
    %v1353 = vrcp.pop %v1352
    %v1354 = vmul.f32 1.0, %v1353
    %v1355 = vadd.f32 %v1264, %v1304
    %v1356 = vxor.u32 %v1355, 2147483648
    %v1357 = vmul.f32 %v1356, 1.442695
    %v1358 = vpow.pop %v1357
    %v1359 = vadd.f32 %v1358, 1.0
    %v1360 = vrcp.pop %v1359
    %v1361 = vmul.f32 1.0, %v1360
    %v1362 = vadd.f32 %v1343, %v700
    %v1363 = vmul.f32 %v1354, %v1362
    %v1364 = vadd.f32 %v1265, %v1363
    %v1365 = vtanh.pop %v1364
    %v1366 = vsub.f32 1.0, %v1361
    %v1367 = vmul.f32 %v1366, %v1365
    %v1368 = vmul.f32 %v1361, %v1259
    %v1369 = vadd.f32 %v1367, %v1368
    %s1370 = smul.u32 7, 3
    %s1371 = smul.addr %s1370, 8
    %s1372 = scalar_lea.vmem [#allocation2], %s1371
    %v1373 = vld [vmem:[%s1372] sm:$0xff]
    %v1374 = vld [vmem:[%s1372 + $0x8] sm:$0xff]
    %v1375 = vld [vmem:[%s1372 + $0x10] sm:$0xff]
    %v1376 = vpack.c.bf16 %v1369, %v1369
    %1377 = vmatprep.subr.bf16.mxu0 %v554
    %1378 = vmatpush1.bf16.msra.mxu0 %v553
    %1379 = vmatprep.subr.bf16.mxu0 %v557
    %1380 = vmatpush1.bf16.msra.mxu0 %v556
    %1381 = vmatprep.subr.bf16.mxu0 %v560
    %1382 = vmatpush1.bf16.msra.mxu0 %v559
    %1383 = vmatprep.subr.bf16.mxu0 %v563
    %1384 = vmatpush1.bf16.msra.mxu0 %v562
    %1385 = vmatprep.subr.bf16.mxu0 %v566
    %1386 = vmatpush1.bf16.msra.mxu0 %v565
    %1387 = vmatprep.subr.bf16.mxu0 %v569
    %1388 = vmatpush1.bf16.msra.mxu0 %v568
    %1389 = vmatprep.subr.bf16.mxu0 %v572
    %1390 = vmatpush1.bf16.msra.mxu0 %v571
    %1391 = vmatprep.subr.bf16.mxu0 %v575
    %1392 = vmatpush1.bf16.msra.mxu0 %v574
    %1393 = vmatprep.subr.bf16.mxu0 0
    %1394 = vmatpush1.bf16.msra.mxu0 0
    %1395 = vmatprep.subr.bf16.mxu0 0
    %1396 = vmatpush1.bf16.msra.mxu0 0
    %1397 = vmatprep.subr.bf16.mxu0 0
    %1398 = vmatpush1.bf16.msra.mxu0 0
    %1399 = vmatprep.subr.bf16.mxu0 0
    %1400 = vmatpush1.bf16.msra.mxu0 0
    %1401 = vmatprep.subr.bf16.mxu0 0
    %1402 = vmatpush1.bf16.msra.mxu0 0
    %1403 = vmatprep.subr.bf16.mxu0 0
    %1404 = vmatpush1.bf16.msra.mxu0 0
    %1405 = vmatprep.subr.bf16.mxu0 0
    %1406 = vmatpush1.bf16.msra.mxu0 0
    %1407 = vmatprep.subr.bf16.mxu0 0
    %1408 = vmatpush1.bf16.msra.mxu0 0
    %1409 = vmatprep.mubr.bf16.mxu0 0
    %1410 = vmatmul.mubr.bf16.gmra.mrb[0].mxu0 %v1376
    %v1411 = vpop.f32.mrb[0].mxu0
    %v1412 = vadd.f32 0.0, %v1411
    %v1413 = vpop.f32.mrb[0].mxu0
    %v1414 = vadd.f32 0.0, %v1413
    %v1415 = vpop.f32.mrb[0].mxu0
    %v1416 = vpop.f32.mrb[0].mxu0
    %1417 = vdwg.mxu0
    %1418 = vmatprep.subr.bf16.mxu0 0
    %1419 = vmatpush1.bf16.msra.mxu0 %v555
    %1420 = vmatprep.subr.bf16.mxu0 0
    %1421 = vmatpush1.bf16.msra.mxu0 %v558
    %1422 = vmatprep.subr.bf16.mxu0 0
    %1423 = vmatpush1.bf16.msra.mxu0 %v561
    %1424 = vmatprep.subr.bf16.mxu0 0
    %1425 = vmatpush1.bf16.msra.mxu0 %v564
    %1426 = vmatprep.subr.bf16.mxu0 0
    %1427 = vmatpush1.bf16.msra.mxu0 %v567
    %1428 = vmatprep.subr.bf16.mxu0 0
    %1429 = vmatpush1.bf16.msra.mxu0 %v570
    %1430 = vmatprep.subr.bf16.mxu0 0
    %1431 = vmatpush1.bf16.msra.mxu0 %v573
    %1432 = vmatprep.subr.bf16.mxu0 0
    %1433 = vmatpush1.bf16.msra.mxu0 %v576
    %1434 = vmatprep.subr.bf16.mxu0 0
    %1435 = vmatpush1.bf16.msra.mxu0 0
    %1436 = vmatprep.subr.bf16.mxu0 0
    %1437 = vmatpush1.bf16.msra.mxu0 0
    %1438 = vmatprep.subr.bf16.mxu0 0
    %1439 = vmatpush1.bf16.msra.mxu0 0
    %1440 = vmatprep.subr.bf16.mxu0 0
    %1441 = vmatpush1.bf16.msra.mxu0 0
    %1442 = vmatprep.subr.bf16.mxu0 0
    %1443 = vmatpush1.bf16.msra.mxu0 0
    %1444 = vmatprep.subr.bf16.mxu0 0
    %1445 = vmatpush1.bf16.msra.mxu0 0
    %1446 = vmatprep.subr.bf16.mxu0 0
    %1447 = vmatpush1.bf16.msra.mxu0 0
    %1448 = vmatprep.subr.bf16.mxu0 0
    %1449 = vmatpush1.bf16.msra.mxu0 0
    %1450 = vmatprep.mubr.bf16.mxu0 0
    %1451 = vmatmul.mubr.bf16.gmra.mrb[0].mxu0 %v1376
    %v1452 = vpop.f32.mrb[0].mxu0
    %v1453 = vadd.f32 0.0, %v1452
    %v1454 = vpop.f32.mrb[0].mxu0
    %v1455 = vpop.f32.mrb[0].mxu0
    %v1456 = vpop.f32.mrb[0].mxu0
    %1457 = vdwg.mxu0
    %v1458 = vadd.f32 %v1373, %v1412
    %v1459 = vxor.u32 %v1458, 2147483648
    %v1460 = vmul.f32 %v1459, 1.442695
    %v1461 = vpow.pop %v1460
    %v1462 = vadd.f32 %v1461, 1.0
    %v1463 = vrcp.pop %v1462
    %v1464 = vmul.f32 1.0, %v1463
    %v1465 = vadd.f32 %v1374, %v1414
    %v1466 = vxor.u32 %v1465, 2147483648
    %v1467 = vmul.f32 %v1466, 1.442695
    %v1468 = vpow.pop %v1467
    %v1469 = vadd.f32 %v1468, 1.0
    %v1470 = vrcp.pop %v1469
    %v1471 = vmul.f32 1.0, %v1470
    %v1472 = vadd.f32 %v1453, %v700
    %v1473 = vmul.f32 %v1464, %v1472
    %v1474 = vadd.f32 %v1375, %v1473
    %v1475 = vtanh.pop %v1474
    %v1476 = vsub.f32 1.0, %v1471
    %v1477 = vmul.f32 %v1476, %v1475
    %v1478 = vmul.f32 %v1471, %v1369
    %v1479 = vadd.f32 %v1477, %v1478
    %1480 = vst [vmem:[#allocation9] sm:$0xff] %v1479
    // Predicated region
    $region34: #{tpu_custom_call.1} parent=1 // pred_check
      _
    $region35: #{tpu_custom_call.1} parent=1 // pred_check_branch
      %1482 = sbr.rel (0) target = $region37
    $region36: #{tpu_custom_call.1} parent=1 // pred_region
      %s1484 = ssub.s32 128, 128
      %1485 = vsyncadd [#allocation5], %s1484
      %s1487 = sshll.u32 [#allocation9], 4
      %s1488 = int_to_ptr.vmem [resolvable:$true] %s1487
      %1490 = dma.vmem_to_hbm [thread:$0]  %s1488, 128, %s5, [#allocation5]
    $region37: #{tpu_custom_call.1} parent=1 // pred_fallthru
      _
    // Predicated region
    $region38: #{tpu_custom_call.1} parent=1 // pred_check
      _
    $region39: #{tpu_custom_call.1} parent=1 // pred_check_branch
      %1492 = sbr.rel (0) target = $region41
    $region40: #{tpu_custom_call.1} parent=1 // pred_region
      %1493 = dma.done [#allocation5], 128
    $region41: #{tpu_custom_call.1} parent=1 // pred_fallthru
      _
    %1494 = vsyncpa [#allocation4], 1
    %1495 = vsyncpa [#allocation7], 1
    %1496 = vsyncpa [#allocation5], 1

</llo_original>
